<compile_context>
chip_gen: v6e
topology: v6e:2x2x1
jax: 0.10.0
libtpu: 0.0.40
codegen_flags: <defaults>
</compile_context>

<pallas_src>
import jax
import jax.numpy as jnp
from jax import lax
from jax.experimental import pallas as pl
from jax.experimental.pallas import tpu as pltpu


# ----------------------------------------------------------------------------
# DetailEmphasis
# ----------------------------------------------------------------------------
def _make_detail_emphasis_kernel(H, W, C):
    HW = H * W
    PAD = W + 1  # zero pad on the flat axis covering all 9 tap offsets

    def kernel(x_ref, mask_ref, wtap_ref, bnb_ref,
               w1t_ref, b1_ref, w2_ref, b2_ref, out_ref):
        x = x_ref[0]                                        # (C, HW) lane-dense

        # In-register zero pad of the flattened spatial axis (no HBM pad pass).
        zpad = jnp.zeros((C, PAD), jnp.float32)
        xpad = jnp.concatenate([zpad, x, zpad], axis=1)     # (C, HW + 2*PAD)

        # 3x3 conv (zero "SAME" padding) as 9 accumulated (C,C)x(C,HW) matmuls
        # over shifted maps.  Vertical out-of-image taps land in the zero pad;
        # horizontal wrap across rows is killed by the precomputed masks.
        conv = jnp.zeros((C, HW), jnp.float32)
        for dy in range(3):
            for dx in range(3):
                s = dy * W + dx
                sl = xpad[:, s:s + HW]                      # (C, HW) static slice
                if dx != 1:
                    sl = sl * mask_ref[dx]                  # (1, HW) broadcast
                conv = conv + jnp.dot(wtap_ref[dy * 3 + dx], sl,
                                      preferred_element_type=jnp.float32)

        # Folded BatchNorm bias (scale already folded into the weights) + ReLU.
        conv = jnp.maximum(conv + bnb_ref[...], 0.0)

        # Attention branch on VPU/XLU: GAP -> 1x1 -> ReLU -> 1x1 -> sigmoid.
        pooled = jnp.sum(conv, axis=1, keepdims=True) * (1.0 / HW)        # (C, 1)
        h1 = jnp.sum(w1t_ref[...] * pooled, axis=0, keepdims=True) + b1_ref[...]  # (1, C)
        h1 = jnp.maximum(h1, 0.0)
        att = jnp.sum(w2_ref[...] * h1, axis=1, keepdims=True) + b2_ref[...]       # (C, 1)
        att = jax.nn.sigmoid(att)

        # x + x * att, stored lane-dense (last dim HW is a multiple of 128).
        out_ref[0] = (conv * (1.0 + att)).astype(out_ref.dtype)

    return kernel


def detail_emphasis(x_nchw, params):
    """Pallas forward of DetailEmphasis.  x_nchw: (N, C, H, W) f32 -> same shape."""
    N, C, H, W = x_nchw.shape
    HW = H * W
    x_flat = x_nchw.reshape(N, C, HW).astype(jnp.float32)   # pure reshape, no copy cost

    # Fold BatchNorm (inference mode) into the conv weights; keep only the bias.
    eps = 1e-5
    scale = params["bn_gamma"] / jnp.sqrt(params["bn_var"] + eps)      # (C,)
    bias = params["bn_beta"] - params["bn_mean"] * scale               # (C,)
    w_eff = params["w_conv"] * scale[None, None, None, :]              # (3,3,Ci,Co) HWIO
    # (tap, C_out, C_in): each tap is a ready-to-use (Co,Ci) matrix.
    w_taps = jnp.transpose(w_eff, (0, 1, 3, 2)).reshape(9, C, C)
    bnb = bias.reshape(C, 1)

    # Attention 1x1 conv weights (PyTorch layout (C_out, C_in)).
    w1t = jnp.transpose(params["w1"])        # (Ci, Co)
    b1 = params["b1"].reshape(1, C)
    w2 = params["w2"]                        # (Co, Ci)
    b2 = params["b2"].reshape(C, 1)

    # Horizontal validity masks per dx tap (dx=0 -> col>=1, dx=1 -> all, dx=2 -> col<=W-2).
    cols = jnp.arange(HW, dtype=jnp.int32) % W
    mask = jnp.stack([(cols >= 1).astype(jnp.float32),
                      jnp.ones((HW,), jnp.float32),
                      (cols <= W - 2).astype(jnp.float32)]).reshape(3, 1, HW)

    kernel = _make_detail_emphasis_kernel(H, W, C)
    out = pl.pallas_call(
        kernel,
        out_shape=jax.ShapeDtypeStruct((N, C, HW), jnp.float32),
        grid_spec=pltpu.PrefetchScalarGridSpec(
            num_scalar_prefetch=0,
            grid=(N,),
            in_specs=[
                pl.BlockSpec((1, C, HW), lambda b: (b, 0, 0)),   # activation, lane-dense
                pl.BlockSpec((3, 1, HW), lambda b: (0, 0, 0)),   # dx masks
                pl.BlockSpec((9, C, C), lambda b: (0, 0, 0)),    # conv taps (BN-folded)
                pl.BlockSpec((C, 1), lambda b: (0, 0)),          # BN bias
                pl.BlockSpec((C, C), lambda b: (0, 0)),          # w1^T
                pl.BlockSpec((1, C), lambda b: (0, 0)),          # b1
                pl.BlockSpec((C, C), lambda b: (0, 0)),          # w2
                pl.BlockSpec((C, 1), lambda b: (0, 0)),          # b2
            ],
            out_specs=pl.BlockSpec((1, C, HW), lambda b: (b, 0, 0)),
        ),
        compiler_params=pltpu.CompilerParams(
            dimension_semantics=("parallel",),
            vmem_limit_bytes=32 * 1024 * 1024,
        ),
    )(x_flat, mask, w_taps, bnb, w1t, b1, w2, b2)
    return out.reshape(N, C, H, W)


def detail_emphasis_ref(x, params):
    """Pure-JAX NCHW reference (matches PyTorch DetailEmphasis with BN in eval mode)."""
    conv = lax.conv_general_dilated(
        x.astype(jnp.float32), params["w_conv"], window_strides=(1, 1), padding="SAME",
        dimension_numbers=("NCHW", "HWIO", "NCHW"))
    eps = 1e-5
    scale = params["bn_gamma"] / jnp.sqrt(params["bn_var"] + eps)
    bias = params["bn_beta"] - params["bn_mean"] * scale
    conv = jnp.maximum(conv * scale[None, :, None, None] + bias[None, :, None, None], 0.0)
    pooled = jnp.mean(conv, axis=(2, 3))                                    # (N, C)
    h1 = jnp.maximum(jnp.einsum("nc,oc->no", pooled, params["w1"]) + params["b1"], 0.0)
    att = jax.nn.sigmoid(jnp.einsum("nc,oc->no", h1, params["w2"]) + params["b2"])
    return conv * (1.0 + att[:, :, None, None])


# ----------------------------------------------------------------------------
# StructurePerception
# ----------------------------------------------------------------------------
def _make_structure_perception_kernel(C, HW):
    def kernel(v_ref, vt_ref, out_ref):
        v = v_ref[0]                                          # (C, HW) lane-dense
        vt = vt_ref[0]                                        # (HW, C)
        att = jnp.dot(v, vt, preferred_element_type=jnp.float32)       # (C, C) gram
        att = jnp.max(att, axis=-1, keepdims=True) - att
        att = att - jnp.max(att, axis=-1, keepdims=True)      # stabilized softmax
        e = jnp.exp(att)
        att = e / jnp.sum(e, axis=-1, keepdims=True)
        out = v + jnp.dot(att, v, preferred_element_type=jnp.float32)  # (C, HW)
        out_ref[0] = out.astype(out_ref.dtype)

    return kernel


def structure_perception(x_nchw):
    """Pallas forward of StructurePerception.  (N, C, H, W) -> (N, C, H, W)."""
    N, C, H, W = x_nchw.shape
    HW = H * W
    v = x_nchw.reshape(N, C, HW).astype(jnp.float32)
    vt = jnp.transpose(v, (0, 2, 1))        # tiny host-side transpose keeps the
                                            # gram matmul in plain (M,K)x(K,N) form
    kernel = _make_structure_perception_kernel(C, HW)
    out = pl.pallas_call(
        kernel,
        out_shape=jax.ShapeDtypeStruct((N, C, HW), jnp.float32),
        grid_spec=pltpu.PrefetchScalarGridSpec(
            num_scalar_prefetch=0,
            grid=(N,),
            in_specs=[
                pl.BlockSpec((1, C, HW), lambda b: (b, 0, 0)),
                pl.BlockSpec((1, HW, C), lambda b: (b, 0, 0)),
            ],
            out_specs=pl.BlockSpec((1, C, HW), lambda b: (b, 0, 0)),
        ),
        compiler_params=pltpu.CompilerParams(
            dimension_semantics=("parallel",),
            vmem_limit_bytes=32 * 1024 * 1024,
        ),
    )(v, vt)
    return out.reshape(N, C, H, W)


def structure_perception_ref(x):
    """Pure-JAX reference of StructurePerception."""
    n, c, h, w = x.shape
    v = x.reshape(n, c, h * w).astype(jnp.float32)
    att = jnp.einsum("ncp,ndp->ncd", v, v, precision=lax.Precision.HIGHEST)
    att = jnp.max(att, axis=-1, keepdims=True) - att
    att = jax.nn.softmax(att, axis=-1)
    out = jnp.einsum("ncd,ndp->ncp", att, v, precision=lax.Precision.HIGHEST)
    return x + out.reshape(n, c, h, w)


# ----------------------------------------------------------------------------
if __name__ == "__main__":
    N, C, H, W = 2, 4, 16, 16
    key = jax.random.PRNGKey(0)
    ks = jax.random.split(key, 11)

    # Deterministic synthetic parameters (shapes implied by DetailEmphasis(ch=C)).
    params = {
        # conv3x3 weight, HWIO layout, bias=False (BN follows)
        "w_conv": 0.2 * jax.random.normal(ks[0], (3, 3, C, C), jnp.float32),
        # BatchNorm2d(C) inference stats / affine params
        "bn_gamma": 1.0 + 0.1 * jax.random.normal(ks[1], (C,), jnp.float32),
        "bn_beta": 0.1 * jax.random.normal(ks[2], (C,), jnp.float32),
        "bn_mean": 0.05 * jax.random.normal(ks[3], (C,), jnp.float32),
        "bn_var": jnp.abs(1.0 + 0.1 * jax.random.normal(ks[4], (C,), jnp.float32)),
        # attention 1x1 convs, PyTorch layout (C_out, C_in)
        "w1": 0.3 * jax.random.normal(ks[5], (C, C), jnp.float32),
        "b1": 0.1 * jax.random.normal(ks[6], (C,), jnp.float32),
        "w2": 0.3 * jax.random.normal(ks[7], (C, C), jnp.float32),
        "b2": 0.1 * jax.random.normal(ks[8], (C,), jnp.float32),
    }
    x = jax.random.normal(ks[9], (N, C, H, W), jnp.float32)

    # --- DetailEmphasis -----------------------------------------------------
    out_de = detail_emphasis(x, params)
    jax.block_until_ready(out_de)
    ref_de = detail_emphasis_ref(x, params)
    assert out_de.shape == (N, C, H, W)
    err_de = float(jnp.max(jnp.abs(out_de - ref_de)))
    assert jnp.allclose(out_de, ref_de, atol=1e-4, rtol=1e-4), \
        f"DetailEmphasis max abs err {err_de}"

    # --- StructurePerception --------------------------------------------------
    # (scaled input keeps the gram-matrix logits in a moderate range for a
    #  tight f32 comparison against the XLA reference)
    x_sp = 0.1 * jax.random.normal(ks[10], (N, C, H, W), jnp.float32)
    out_sp = structure_perception(x_sp)
    jax.block_until_ready(out_sp)
    ref_sp = structure_perception_ref(x_sp)
    err_sp = float(jnp.max(jnp.abs(out_sp - ref_sp)))
    assert jnp.allclose(out_sp, ref_sp, atol=1e-3, rtol=1e-3), \
        f"StructurePerception max abs err {err_sp}"

    print("KERNEL_OK")
</pallas_src>

<mosaic_0001>
module attributes {stable_mosaic.version = 11 : i64} {
  func.func @kernel(%arg0: i32, %arg1: memref<1x4x256xf32, #tpu.memory_space<vmem>>, %arg2: memref<3x1x256xf32, #tpu.memory_space<vmem>>, %arg3: memref<9x4x4xf32, #tpu.memory_space<vmem>>, %arg4: memref<4x1xf32, #tpu.memory_space<vmem>>, %arg5: memref<4x4xf32, #tpu.memory_space<vmem>>, %arg6: memref<1x4xf32, #tpu.memory_space<vmem>>, %arg7: memref<4x4xf32, #tpu.memory_space<vmem>>, %arg8: memref<4x1xf32, #tpu.memory_space<vmem>>, %arg9: memref<1x4x256xf32, #tpu.memory_space<vmem>>) attributes {dimension_semantics = [#tpu.dimension_semantics<parallel>], iteration_bounds = array<i64: 2>, scalar_prefetch = 0 : i64, scratch_operands = 0 : i64, tpu.core_type = #tpu.core_type<tc>, window_params = [{transform_indices = @transform_0, window_bounds = array<i64: 1, 4, 256>}, {pipeline_mode = #tpu.pipeline_mode<synchronous>, transform_indices = @transform_1, window_bounds = array<i64: 3, 1, 256>}, {pipeline_mode = #tpu.pipeline_mode<synchronous>, transform_indices = @transform_2, window_bounds = array<i64: 9, 4, 4>}, {pipeline_mode = #tpu.pipeline_mode<synchronous>, transform_indices = @transform_3, window_bounds = array<i64: 4, 1>}, {pipeline_mode = #tpu.pipeline_mode<synchronous>, transform_indices = @transform_4, window_bounds = array<i64: 4, 4>}, {pipeline_mode = #tpu.pipeline_mode<synchronous>, transform_indices = @transform_5, window_bounds = array<i64: 1, 4>}, {pipeline_mode = #tpu.pipeline_mode<synchronous>, transform_indices = @transform_6, window_bounds = array<i64: 4, 4>}, {pipeline_mode = #tpu.pipeline_mode<synchronous>, transform_indices = @transform_7, window_bounds = array<i64: 4, 1>}, {transform_indices = @transform_8, window_bounds = array<i64: 1, 4, 256>}]} {
    %c0 = arith.constant 0 : index
    %c0_0 = arith.constant 0 : index
    %c0_1 = arith.constant 0 : index
    %0 = vector.load %arg1[%c0, %c0_0, %c0_1] : memref<1x4x256xf32, #tpu.memory_space<vmem>>, vector<1x4x256xf32>
    %1 = vector.shape_cast %0 : vector<1x4x256xf32> to vector<4x256xf32>
    %cst = arith.constant 0.000000e+00 : f32
    %2 = vector.broadcast %cst : f32 to vector<4x17xf32>
    %3 = tpu.concatenate %2, %1, %2 in 1 : vector<4x17xf32>, vector<4x256xf32>, vector<4x17xf32> -> vector<4x290xf32>
    %cst_2 = arith.constant 0.000000e+00 : f32
    %4 = vector.broadcast %cst_2 : f32 to vector<4x256xf32>
    %5 = vector.extract_strided_slice %3 {offsets = [0, 0], sizes = [4, 256], strides = [1, 1]} : vector<4x290xf32> to vector<4x256xf32>
    %c0_3 = arith.constant 0 : index
    %c0_4 = arith.constant 0 : index
    %c0_5 = arith.constant 0 : index
    %6 = vector.load %arg2[%c0_3, %c0_4, %c0_5] : memref<3x1x256xf32, #tpu.memory_space<vmem>>, vector<1x1x256xf32>
    %7 = vector.shape_cast %6 : vector<1x1x256xf32> to vector<1x256xf32>
    %8 = vector.broadcast %7 : vector<1x256xf32> to vector<4x256xf32>
    %9 = arith.mulf %5, %8 : vector<4x256xf32>
    %c0_6 = arith.constant 0 : index
    %c0_7 = arith.constant 0 : index
    %c0_8 = arith.constant 0 : index
    %10 = vector.load %arg3[%c0_6, %c0_7, %c0_8] : memref<9x4x4xf32, #tpu.memory_space<vmem>>, vector<1x4x4xf32>
    %11 = vector.shape_cast %10 : vector<1x4x4xf32> to vector<4x4xf32>
    %cst_9 = arith.constant dense<0.000000e+00> : vector<4x256xf32>
    %12 = tpu.matmul %11, %9, %cst_9 {dimension_numbers = #tpu.dot_dimension_numbers<[1], [0], [0], [1], [0, 0, 1, 1], [], []>} : vector<4x4xf32>, vector<4x256xf32>, vector<4x256xf32> -> vector<4x256xf32>
    %13 = arith.addf %4, %12 : vector<4x256xf32>
    %14 = vector.extract_strided_slice %3 {offsets = [0, 1], sizes = [4, 256], strides = [1, 1]} : vector<4x290xf32> to vector<4x256xf32>
    %c1 = arith.constant 1 : index
    %c0_10 = arith.constant 0 : index
    %c0_11 = arith.constant 0 : index
    %15 = vector.load %arg3[%c1, %c0_10, %c0_11] : memref<9x4x4xf32, #tpu.memory_space<vmem>>, vector<1x4x4xf32>
    %16 = vector.shape_cast %15 : vector<1x4x4xf32> to vector<4x4xf32>
    %cst_12 = arith.constant dense<0.000000e+00> : vector<4x256xf32>
    %17 = tpu.matmul %16, %14, %cst_12 {dimension_numbers = #tpu.dot_dimension_numbers<[1], [0], [0], [1], [0, 0, 1, 1], [], []>} : vector<4x4xf32>, vector<4x256xf32>, vector<4x256xf32> -> vector<4x256xf32>
    %18 = arith.addf %13, %17 : vector<4x256xf32>
    %19 = vector.extract_strided_slice %3 {offsets = [0, 2], sizes = [4, 256], strides = [1, 1]} : vector<4x290xf32> to vector<4x256xf32>
    %c2 = arith.constant 2 : index
    %c0_13 = arith.constant 0 : index
    %c0_14 = arith.constant 0 : index
    %20 = vector.load %arg2[%c2, %c0_13, %c0_14] : memref<3x1x256xf32, #tpu.memory_space<vmem>>, vector<1x1x256xf32>
    %21 = vector.shape_cast %20 : vector<1x1x256xf32> to vector<1x256xf32>
    %22 = vector.broadcast %21 : vector<1x256xf32> to vector<4x256xf32>
    %23 = arith.mulf %19, %22 : vector<4x256xf32>
    %c2_15 = arith.constant 2 : index
    %c0_16 = arith.constant 0 : index
    %c0_17 = arith.constant 0 : index
    %24 = vector.load %arg3[%c2_15, %c0_16, %c0_17] : memref<9x4x4xf32, #tpu.memory_space<vmem>>, vector<1x4x4xf32>
    %25 = vector.shape_cast %24 : vector<1x4x4xf32> to vector<4x4xf32>
    %cst_18 = arith.constant dense<0.000000e+00> : vector<4x256xf32>
    %26 = tpu.matmul %25, %23, %cst_18 {dimension_numbers = #tpu.dot_dimension_numbers<[1], [0], [0], [1], [0, 0, 1, 1], [], []>} : vector<4x4xf32>, vector<4x256xf32>, vector<4x256xf32> -> vector<4x256xf32>
    %27 = arith.addf %18, %26 : vector<4x256xf32>
    %28 = vector.extract_strided_slice %3 {offsets = [0, 16], sizes = [4, 256], strides = [1, 1]} : vector<4x290xf32> to vector<4x256xf32>
    %c0_19 = arith.constant 0 : index
    %c0_20 = arith.constant 0 : index
    %c0_21 = arith.constant 0 : index
    %29 = vector.load %arg2[%c0_19, %c0_20, %c0_21] : memref<3x1x256xf32, #tpu.memory_space<vmem>>, vector<1x1x256xf32>
    %30 = vector.shape_cast %29 : vector<1x1x256xf32> to vector<1x256xf32>
    %31 = vector.broadcast %30 : vector<1x256xf32> to vector<4x256xf32>
    %32 = arith.mulf %28, %31 : vector<4x256xf32>
    %c3 = arith.constant 3 : index
    %c0_22 = arith.constant 0 : index
    %c0_23 = arith.constant 0 : index
    %33 = vector.load %arg3[%c3, %c0_22, %c0_23] : memref<9x4x4xf32, #tpu.memory_space<vmem>>, vector<1x4x4xf32>
    %34 = vector.shape_cast %33 : vector<1x4x4xf32> to vector<4x4xf32>
    %cst_24 = arith.constant dense<0.000000e+00> : vector<4x256xf32>
    %35 = tpu.matmul %34, %32, %cst_24 {dimension_numbers = #tpu.dot_dimension_numbers<[1], [0], [0], [1], [0, 0, 1, 1], [], []>} : vector<4x4xf32>, vector<4x256xf32>, vector<4x256xf32> -> vector<4x256xf32>
    %36 = arith.addf %27, %35 : vector<4x256xf32>
    %37 = vector.extract_strided_slice %3 {offsets = [0, 17], sizes = [4, 256], strides = [1, 1]} : vector<4x290xf32> to vector<4x256xf32>
    %c4 = arith.constant 4 : index
    %c0_25 = arith.constant 0 : index
    %c0_26 = arith.constant 0 : index
    %38 = vector.load %arg3[%c4, %c0_25, %c0_26] : memref<9x4x4xf32, #tpu.memory_space<vmem>>, vector<1x4x4xf32>
    %39 = vector.shape_cast %38 : vector<1x4x4xf32> to vector<4x4xf32>
    %cst_27 = arith.constant dense<0.000000e+00> : vector<4x256xf32>
    %40 = tpu.matmul %39, %37, %cst_27 {dimension_numbers = #tpu.dot_dimension_numbers<[1], [0], [0], [1], [0, 0, 1, 1], [], []>} : vector<4x4xf32>, vector<4x256xf32>, vector<4x256xf32> -> vector<4x256xf32>
    %41 = arith.addf %36, %40 : vector<4x256xf32>
    %42 = vector.extract_strided_slice %3 {offsets = [0, 18], sizes = [4, 256], strides = [1, 1]} : vector<4x290xf32> to vector<4x256xf32>
    %c2_28 = arith.constant 2 : index
    %c0_29 = arith.constant 0 : index
    %c0_30 = arith.constant 0 : index
    %43 = vector.load %arg2[%c2_28, %c0_29, %c0_30] : memref<3x1x256xf32, #tpu.memory_space<vmem>>, vector<1x1x256xf32>
    %44 = vector.shape_cast %43 : vector<1x1x256xf32> to vector<1x256xf32>
    %45 = vector.broadcast %44 : vector<1x256xf32> to vector<4x256xf32>
    %46 = arith.mulf %42, %45 : vector<4x256xf32>
    %c5 = arith.constant 5 : index
    %c0_31 = arith.constant 0 : index
    %c0_32 = arith.constant 0 : index
    %47 = vector.load %arg3[%c5, %c0_31, %c0_32] : memref<9x4x4xf32, #tpu.memory_space<vmem>>, vector<1x4x4xf32>
    %48 = vector.shape_cast %47 : vector<1x4x4xf32> to vector<4x4xf32>
    %cst_33 = arith.constant dense<0.000000e+00> : vector<4x256xf32>
    %49 = tpu.matmul %48, %46, %cst_33 {dimension_numbers = #tpu.dot_dimension_numbers<[1], [0], [0], [1], [0, 0, 1, 1], [], []>} : vector<4x4xf32>, vector<4x256xf32>, vector<4x256xf32> -> vector<4x256xf32>
    %50 = arith.addf %41, %49 : vector<4x256xf32>
    %51 = vector.extract_strided_slice %3 {offsets = [0, 32], sizes = [4, 256], strides = [1, 1]} : vector<4x290xf32> to vector<4x256xf32>
    %c0_34 = arith.constant 0 : index
    %c0_35 = arith.constant 0 : index
    %c0_36 = arith.constant 0 : index
    %52 = vector.load %arg2[%c0_34, %c0_35, %c0_36] : memref<3x1x256xf32, #tpu.memory_space<vmem>>, vector<1x1x256xf32>
    %53 = vector.shape_cast %52 : vector<1x1x256xf32> to vector<1x256xf32>
    %54 = vector.broadcast %53 : vector<1x256xf32> to vector<4x256xf32>
    %55 = arith.mulf %51, %54 : vector<4x256xf32>
    %c6 = arith.constant 6 : index
    %c0_37 = arith.constant 0 : index
    %c0_38 = arith.constant 0 : index
    %56 = vector.load %arg3[%c6, %c0_37, %c0_38] : memref<9x4x4xf32, #tpu.memory_space<vmem>>, vector<1x4x4xf32>
    %57 = vector.shape_cast %56 : vector<1x4x4xf32> to vector<4x4xf32>
    %cst_39 = arith.constant dense<0.000000e+00> : vector<4x256xf32>
    %58 = tpu.matmul %57, %55, %cst_39 {dimension_numbers = #tpu.dot_dimension_numbers<[1], [0], [0], [1], [0, 0, 1, 1], [], []>} : vector<4x4xf32>, vector<4x256xf32>, vector<4x256xf32> -> vector<4x256xf32>
    %59 = arith.addf %50, %58 : vector<4x256xf32>
    %60 = vector.extract_strided_slice %3 {offsets = [0, 33], sizes = [4, 256], strides = [1, 1]} : vector<4x290xf32> to vector<4x256xf32>
    %c7 = arith.constant 7 : index
    %c0_40 = arith.constant 0 : index
    %c0_41 = arith.constant 0 : index
    %61 = vector.load %arg3[%c7, %c0_40, %c0_41] : memref<9x4x4xf32, #tpu.memory_space<vmem>>, vector<1x4x4xf32>
    %62 = vector.shape_cast %61 : vector<1x4x4xf32> to vector<4x4xf32>
    %cst_42 = arith.constant dense<0.000000e+00> : vector<4x256xf32>
    %63 = tpu.matmul %62, %60, %cst_42 {dimension_numbers = #tpu.dot_dimension_numbers<[1], [0], [0], [1], [0, 0, 1, 1], [], []>} : vector<4x4xf32>, vector<4x256xf32>, vector<4x256xf32> -> vector<4x256xf32>
    %64 = arith.addf %59, %63 : vector<4x256xf32>
    %65 = vector.extract_strided_slice %3 {offsets = [0, 34], sizes = [4, 256], strides = [1, 1]} : vector<4x290xf32> to vector<4x256xf32>
    %c2_43 = arith.constant 2 : index
    %c0_44 = arith.constant 0 : index
    %c0_45 = arith.constant 0 : index
    %66 = vector.load %arg2[%c2_43, %c0_44, %c0_45] : memref<3x1x256xf32, #tpu.memory_space<vmem>>, vector<1x1x256xf32>
    %67 = vector.shape_cast %66 : vector<1x1x256xf32> to vector<1x256xf32>
    %68 = vector.broadcast %67 : vector<1x256xf32> to vector<4x256xf32>
    %69 = arith.mulf %65, %68 : vector<4x256xf32>
    %c8 = arith.constant 8 : index
    %c0_46 = arith.constant 0 : index
    %c0_47 = arith.constant 0 : index
    %70 = vector.load %arg3[%c8, %c0_46, %c0_47] : memref<9x4x4xf32, #tpu.memory_space<vmem>>, vector<1x4x4xf32>
    %71 = vector.shape_cast %70 : vector<1x4x4xf32> to vector<4x4xf32>
    %cst_48 = arith.constant dense<0.000000e+00> : vector<4x256xf32>
    %72 = tpu.matmul %71, %69, %cst_48 {dimension_numbers = #tpu.dot_dimension_numbers<[1], [0], [0], [1], [0, 0, 1, 1], [], []>} : vector<4x4xf32>, vector<4x256xf32>, vector<4x256xf32> -> vector<4x256xf32>
    %73 = arith.addf %64, %72 : vector<4x256xf32>
    %c0_49 = arith.constant 0 : index
    %c0_50 = arith.constant 0 : index
    %74 = vector.load %arg4[%c0_49, %c0_50] : memref<4x1xf32, #tpu.memory_space<vmem>>, vector<4x1xf32>
    %75 = vector.broadcast %74 : vector<4x1xf32> to vector<4x256xf32>
    %76 = arith.addf %73, %75 : vector<4x256xf32>
    %cst_51 = arith.constant 0.000000e+00 : f32
    %77 = vector.broadcast %cst_51 : f32 to vector<4x256xf32>
    %78 = arith.maximumf %76, %77 : vector<4x256xf32>
    %cst_52 = arith.constant dense<0.000000e+00> : vector<4xf32>
    %79 = vector.multi_reduction <add>, %78, %cst_52 [1] : vector<4x256xf32> to vector<4xf32>
    %80 = vector.shape_cast %79 : vector<4xf32> to vector<4x1xf32>
    %cst_53 = arith.constant 3.906250e-03 : f32
    %81 = vector.broadcast %cst_53 : f32 to vector<4x1xf32>
    %82 = arith.mulf %80, %81 : vector<4x1xf32>
    %c0_54 = arith.constant 0 : index
    %c0_55 = arith.constant 0 : index
    %83 = vector.load %arg5[%c0_54, %c0_55] : memref<4x4xf32, #tpu.memory_space<vmem>>, vector<4x4xf32>
    %84 = vector.broadcast %82 : vector<4x1xf32> to vector<4x4xf32>
    %85 = arith.mulf %83, %84 : vector<4x4xf32>
    %cst_56 = arith.constant dense<0.000000e+00> : vector<4xf32>
    %86 = vector.multi_reduction <add>, %85, %cst_56 [0] : vector<4x4xf32> to vector<4xf32>
    %87 = vector.shape_cast %86 : vector<4xf32> to vector<1x4xf32>
    %c0_57 = arith.constant 0 : index
    %c0_58 = arith.constant 0 : index
    %88 = vector.load %arg6[%c0_57, %c0_58] : memref<1x4xf32, #tpu.memory_space<vmem>>, vector<1x4xf32>
    %89 = arith.addf %87, %88 : vector<1x4xf32>
    %cst_59 = arith.constant 0.000000e+00 : f32
    %90 = vector.broadcast %cst_59 : f32 to vector<1x4xf32>
    %91 = arith.maximumf %89, %90 : vector<1x4xf32>
    %c0_60 = arith.constant 0 : index
    %c0_61 = arith.constant 0 : index
    %92 = vector.load %arg7[%c0_60, %c0_61] : memref<4x4xf32, #tpu.memory_space<vmem>>, vector<4x4xf32>
    %93 = vector.broadcast %91 : vector<1x4xf32> to vector<4x4xf32>
    %94 = arith.mulf %92, %93 : vector<4x4xf32>
    %cst_62 = arith.constant dense<0.000000e+00> : vector<4xf32>
    %95 = vector.multi_reduction <add>, %94, %cst_62 [1] : vector<4x4xf32> to vector<4xf32>
    %96 = vector.shape_cast %95 : vector<4xf32> to vector<4x1xf32>
    %c0_63 = arith.constant 0 : index
    %c0_64 = arith.constant 0 : index
    %97 = vector.load %arg8[%c0_63, %c0_64] : memref<4x1xf32, #tpu.memory_space<vmem>>, vector<4x1xf32>
    %98 = arith.addf %96, %97 : vector<4x1xf32>
    %99 = arith.negf %98 : vector<4x1xf32>
    %100 = math.exp %99 : vector<4x1xf32>
    %cst_65 = arith.constant 1.000000e+00 : f32
    %101 = vector.broadcast %cst_65 : f32 to vector<4x1xf32>
    %102 = arith.addf %101, %100 : vector<4x1xf32>
    %103 = arith.divf %101, %102 : vector<4x1xf32>
    %cst_66 = arith.constant 1.000000e+00 : f32
    %104 = vector.broadcast %cst_66 : f32 to vector<4x1xf32>
    %105 = arith.addf %104, %103 : vector<4x1xf32>
    %106 = vector.broadcast %105 : vector<4x1xf32> to vector<4x256xf32>
    %107 = arith.mulf %78, %106 : vector<4x256xf32>
    %c0_67 = arith.constant 0 : index
    %c0_68 = arith.constant 0 : index
    %c0_69 = arith.constant 0 : index
    %108 = vector.load %arg9[%c0_67, %c0_68, %c0_69] : memref<1x4x256xf32, #tpu.memory_space<vmem>>, vector<1x4x256xf32>
    %109 = vector.shape_cast %108 : vector<1x4x256xf32> to vector<4x256xf32>
    %110 = vector.shape_cast %107 : vector<4x256xf32> to vector<1x4x256xf32>
    tpu.vector_store %arg9[%c0_67, %c0_68, %c0_69], %110 {strides = array<i32>} : memref<1x4x256xf32, #tpu.memory_space<vmem>>, vector<1x4x256xf32>,
    return
  }
  func.func @transform_0(%arg0: i32) -> (i32, i32, i32) {
    %c0_i32 = arith.constant 0 : i32
    %c0_i32_0 = arith.constant 0 : i32
    %c0_i32_1 = arith.constant 0 : i32
    return %arg0, %c0_i32, %c0_i32_0 : i32, i32, i32
  }
  func.func @transform_1(%arg0: i32) -> (i32, i32, i32) {
    %c0_i32 = arith.constant 0 : i32
    %c0_i32_0 = arith.constant 0 : i32
    %c0_i32_1 = arith.constant 0 : i32
    %c0_i32_2 = arith.constant 0 : i32
    return %c0_i32, %c0_i32_0, %c0_i32_1 : i32, i32, i32
  }
  func.func @transform_2(%arg0: i32) -> (i32, i32, i32) {
    %c0_i32 = arith.constant 0 : i32
    %c0_i32_0 = arith.constant 0 : i32
    %c0_i32_1 = arith.constant 0 : i32
    %c0_i32_2 = arith.constant 0 : i32
    return %c0_i32, %c0_i32_0, %c0_i32_1 : i32, i32, i32
  }
  func.func @transform_3(%arg0: i32) -> (i32, i32) {
    %c0_i32 = arith.constant 0 : i32
    %c0_i32_0 = arith.constant 0 : i32
    %c0_i32_1 = arith.constant 0 : i32
    return %c0_i32, %c0_i32_0 : i32, i32
  }
  func.func @transform_4(%arg0: i32) -> (i32, i32) {
    %c0_i32 = arith.constant 0 : i32
    %c0_i32_0 = arith.constant 0 : i32
    %c0_i32_1 = arith.constant 0 : i32
    return %c0_i32, %c0_i32_0 : i32, i32
  }
  func.func @transform_5(%arg0: i32) -> (i32, i32) {
    %c0_i32 = arith.constant 0 : i32
    %c0_i32_0 = arith.constant 0 : i32
    %c0_i32_1 = arith.constant 0 : i32
    return %c0_i32, %c0_i32_0 : i32, i32
  }
  func.func @transform_6(%arg0: i32) -> (i32, i32) {
    %c0_i32 = arith.constant 0 : i32
    %c0_i32_0 = arith.constant 0 : i32
    %c0_i32_1 = arith.constant 0 : i32
    return %c0_i32, %c0_i32_0 : i32, i32
  }
  func.func @transform_7(%arg0: i32) -> (i32, i32) {
    %c0_i32 = arith.constant 0 : i32
    %c0_i32_0 = arith.constant 0 : i32
    %c0_i32_1 = arith.constant 0 : i32
    return %c0_i32, %c0_i32_0 : i32, i32
  }
  func.func @transform_8(%arg0: i32) -> (i32, i32, i32) {
    %c0_i32 = arith.constant 0 : i32
    %c0_i32_0 = arith.constant 0 : i32
    %c0_i32_1 = arith.constant 0 : i32
    return %arg0, %c0_i32, %c0_i32_0 : i32, i32, i32
  }
}

</mosaic_0001>

<llo_original>
// kernel: tpu_custom_call.1
$region0: #{tpu_custom_call.1}
  #allocation0 [shape = 'u32[]', space=smem, size = 0x4, offset = 0x4, fixed_abs, tag = 'smem constant byte address 0x4 - core index']
  #allocation1 [shape = 'u32[144,128]{1,0:T(1,128)}', space=vmem, size = 0x12000, scoped, tag = 'internal scratch']
  %s0 = inlined_call_operand.vmem [shape: f32[2,4,256], index: 0, kind: input, shape index: {}]
  %s1 = inlined_call_operand.vmem [shape: f32[3,1,256], index: 1, kind: input, shape index: {}]
  %s2 = inlined_call_operand.vmem [shape: f32[9,4,4], index: 2, kind: input, shape index: {}]
  %s3 = inlined_call_operand.vmem [shape: f32[4,1], index: 3, kind: input, shape index: {}]
  %s4 = inlined_call_operand.vmem [shape: f32[4,4], index: 4, kind: input, shape index: {}]
  %s5 = inlined_call_operand.vmem [shape: f32[1,4], index: 5, kind: input, shape index: {}]
  %s6 = inlined_call_operand.vmem [shape: f32[4,4], index: 6, kind: input, shape index: {}]
  %s7 = inlined_call_operand.vmem [shape: f32[4,1], index: 7, kind: input, shape index: {}]
  %s8 = inlined_call_operand.hbm [shape: f32[2,4,256], index: 8, kind: output, shape index: {}]
  %s9 = sld [smem:[#allocation0]]
  $region65: #{tpu_custom_call.1} parent=0
    _
  %s11 = ssub.s32 1, %s9
  %s12 = scalar_select 0, %s11, %s9
  $region1: #{tpu_custom_call.1} parent=0
    #allocation2 [shape = 'u8[8192]{0}', space=vmem, size = 0x2000, scoped, tag = 'output window, operand 0']
    #allocation3 [shape = 's32[2]{0}', space=sflag, size = 0x8, scoped, tag = 'scoped memory for tpu_custom_call.1']
    %13 = vsyncpa [#allocation3], 0
    %s14 = scalar_lea.sflag [#allocation3], 1
    %15 = vsyncpa %s14, 0
    loop: start=0, step=1, limit=4
    $region2: #{tpu_custom_call.1} parent=1 // loop_pre_header
      _
    $region3: #{tpu_custom_call.1} parent=1 // loop_header
      %s17 = sphi 0, %s21
      %p18 = scmp.ge.s32.totalorder %s17, 4
      %s27 = sphi 0, %s29
      %s30 = sphi 0, %s27
      %s31 = sphi 0, %s30
      %s47 = sphi 0, %s31
      %s51 = sphi 0, %s51
      %s53 = sphi 0, %s51
      %s54 = sphi 0, %s53
      %s68 = sphi 0, %s54
      %s72 = sphi 0, %s72
      %s74 = sphi 0, %s72
      %s75 = sphi 0, %s74
      %s89 = sphi 0, %s75
      %s93 = sphi 0, %s93
      %s95 = sphi 0, %s93
      %s96 = sphi 0, %s95
      %s110 = sphi 0, %s96
      %s114 = sphi 0, %s114
      %s116 = sphi 0, %s114
      %s117 = sphi 0, %s116
      %s131 = sphi 0, %s117
      %s135 = sphi 0, %s135
      %s137 = sphi 0, %s135
      %s138 = sphi 0, %s137
      %s152 = sphi 0, %s138
      %s156 = sphi 0, %s156
      %s158 = sphi 0, %s156
      %s159 = sphi 0, %s158
      %s173 = sphi 0, %s159
      %s177 = sphi 0, %s177
      %s179 = sphi 0, %s177
      %s180 = sphi 0, %s179
      %s194 = sphi 0, %s180
      %s200 = sphi 0, %s202
      %s203 = sphi 0, %s200
      %s204 = sphi 0, %s203
      %s220 = sphi 0, %s204
    $region4: #{tpu_custom_call.1} parent=1 // loop_header_branch
      %20 = sbr.rel (%p18) target = $region8
    $region5: #{tpu_custom_call.1} parent=1 // loop_body
      %s22 = ssub.s32 %s17, 1
      %s23 = ssub.s32 %s17, 2
      %s24 = sadd.s32 %s17, 1
      %s25 = ssub.s32 %s17, %s24
      %p26 = scmp.eq.s32.totalorder %s25, 0
      %s28 = sadd.s32 %s27, 1
      %s29 = scalar_select %p26, %s27, %s28
      %p32 = pneg %p26
      %p33 = scmp.eq.s32.totalorder %s17, 1
      %p34 = por %p32, %p33
      %p35 = scmp.ne.s32.totalorder %s27, %s30
      %p36 = scmp.eq.s32.totalorder %s17, 0
      %p37 = por %p35, %p36
      %p38 = scmp.ne.s32.totalorder %s27, %s30
      %p39 = scmp.eq.s32.totalorder %s22, 1
      %p40 = por %p38, %p39
      %p41 = scmp.ne.s32.totalorder %s30, %s31
      %p42 = scmp.eq.s32.totalorder %s22, 0
      %p43 = por %p41, %p42
      %p44 = scmp.ne.s32.totalorder %s30, %s31
      %p45 = scmp.eq.s32.totalorder %s23, 1
      %p46 = por %p44, %p45
      %p48 = scmp.ne.s32.totalorder %s31, %s47
      %p49 = scmp.eq.s32.totalorder %s23, 0
      %p50 = por %p48, %p49
      %s52 = sadd.s32 %s51, 1
      %p55 = scmp.eq.s32.totalorder %s17, 1
      %p56 = scmp.ne.s32.totalorder %s51, %s53
      %p57 = scmp.eq.s32.totalorder %s17, 0
      %p58 = por %p56, %p57
      %p59 = scmp.ne.s32.totalorder %s51, %s53
      %p60 = scmp.eq.s32.totalorder %s22, 1
      %p61 = por %p59, %p60
      %p62 = scmp.ne.s32.totalorder %s53, %s54
      %p63 = scmp.eq.s32.totalorder %s22, 0
      %p64 = por %p62, %p63
      %p65 = scmp.ne.s32.totalorder %s53, %s54
      %p66 = scmp.eq.s32.totalorder %s23, 1
      %p67 = por %p65, %p66
      %p69 = scmp.ne.s32.totalorder %s54, %s68
      %p70 = scmp.eq.s32.totalorder %s23, 0
      %p71 = por %p69, %p70
      %s73 = sadd.s32 %s72, 1
      %p76 = scmp.eq.s32.totalorder %s17, 1
      %p77 = scmp.ne.s32.totalorder %s72, %s74
      %p78 = scmp.eq.s32.totalorder %s17, 0
      %p79 = por %p77, %p78
      %p80 = scmp.ne.s32.totalorder %s72, %s74
      %p81 = scmp.eq.s32.totalorder %s22, 1
      %p82 = por %p80, %p81
      %p83 = scmp.ne.s32.totalorder %s74, %s75
      %p84 = scmp.eq.s32.totalorder %s22, 0
      %p85 = por %p83, %p84
      %p86 = scmp.ne.s32.totalorder %s74, %s75
      %p87 = scmp.eq.s32.totalorder %s23, 1
      %p88 = por %p86, %p87
      %p90 = scmp.ne.s32.totalorder %s75, %s89
      %p91 = scmp.eq.s32.totalorder %s23, 0
      %p92 = por %p90, %p91
      %s94 = sadd.s32 %s93, 1
      %p97 = scmp.eq.s32.totalorder %s17, 1
      %p98 = scmp.ne.s32.totalorder %s93, %s95
      %p99 = scmp.eq.s32.totalorder %s17, 0
      %p100 = por %p98, %p99
      %p101 = scmp.ne.s32.totalorder %s93, %s95
      %p102 = scmp.eq.s32.totalorder %s22, 1
      %p103 = por %p101, %p102
      %p104 = scmp.ne.s32.totalorder %s95, %s96
      %p105 = scmp.eq.s32.totalorder %s22, 0
      %p106 = por %p104, %p105
      %p107 = scmp.ne.s32.totalorder %s95, %s96
      %p108 = scmp.eq.s32.totalorder %s23, 1
      %p109 = por %p107, %p108
      %p111 = scmp.ne.s32.totalorder %s96, %s110
      %p112 = scmp.eq.s32.totalorder %s23, 0
      %p113 = por %p111, %p112
      %s115 = sadd.s32 %s114, 1
      %p118 = scmp.eq.s32.totalorder %s17, 1
      %p119 = scmp.ne.s32.totalorder %s114, %s116
      %p120 = scmp.eq.s32.totalorder %s17, 0
      %p121 = por %p119, %p120
      %p122 = scmp.ne.s32.totalorder %s114, %s116
      %p123 = scmp.eq.s32.totalorder %s22, 1
      %p124 = por %p122, %p123
      %p125 = scmp.ne.s32.totalorder %s116, %s117
      %p126 = scmp.eq.s32.totalorder %s22, 0
      %p127 = por %p125, %p126
      %p128 = scmp.ne.s32.totalorder %s116, %s117
      %p129 = scmp.eq.s32.totalorder %s23, 1
      %p130 = por %p128, %p129
      %p132 = scmp.ne.s32.totalorder %s117, %s131
      %p133 = scmp.eq.s32.totalorder %s23, 0
      %p134 = por %p132, %p133
      %s136 = sadd.s32 %s135, 1
      %p139 = scmp.eq.s32.totalorder %s17, 1
      %p140 = scmp.ne.s32.totalorder %s135, %s137
      %p141 = scmp.eq.s32.totalorder %s17, 0
      %p142 = por %p140, %p141
      %p143 = scmp.ne.s32.totalorder %s135, %s137
      %p144 = scmp.eq.s32.totalorder %s22, 1
      %p145 = por %p143, %p144
      %p146 = scmp.ne.s32.totalorder %s137, %s138
      %p147 = scmp.eq.s32.totalorder %s22, 0
      %p148 = por %p146, %p147
      %p149 = scmp.ne.s32.totalorder %s137, %s138
      %p150 = scmp.eq.s32.totalorder %s23, 1
      %p151 = por %p149, %p150
      %p153 = scmp.ne.s32.totalorder %s138, %s152
      %p154 = scmp.eq.s32.totalorder %s23, 0
      %p155 = por %p153, %p154
      %s157 = sadd.s32 %s156, 1
      %p160 = scmp.eq.s32.totalorder %s17, 1
      %p161 = scmp.ne.s32.totalorder %s156, %s158
      %p162 = scmp.eq.s32.totalorder %s17, 0
      %p163 = por %p161, %p162
      %p164 = scmp.ne.s32.totalorder %s156, %s158
      %p165 = scmp.eq.s32.totalorder %s22, 1
      %p166 = por %p164, %p165
      %p167 = scmp.ne.s32.totalorder %s158, %s159
      %p168 = scmp.eq.s32.totalorder %s22, 0
      %p169 = por %p167, %p168
      %p170 = scmp.ne.s32.totalorder %s158, %s159
      %p171 = scmp.eq.s32.totalorder %s23, 1
      %p172 = por %p170, %p171
      %p174 = scmp.ne.s32.totalorder %s159, %s173
      %p175 = scmp.eq.s32.totalorder %s23, 0
      %p176 = por %p174, %p175
      %s178 = sadd.s32 %s177, 1
      %p181 = scmp.eq.s32.totalorder %s17, 1
      %p182 = scmp.ne.s32.totalorder %s177, %s179
      %p183 = scmp.eq.s32.totalorder %s17, 0
      %p184 = por %p182, %p183
      %p185 = scmp.ne.s32.totalorder %s177, %s179
      %p186 = scmp.eq.s32.totalorder %s22, 1
      %p187 = por %p185, %p186
      %p188 = scmp.ne.s32.totalorder %s179, %s180
      %p189 = scmp.eq.s32.totalorder %s22, 0
      %p190 = por %p188, %p189
      %p191 = scmp.ne.s32.totalorder %s179, %s180
      %p192 = scmp.eq.s32.totalorder %s23, 1
      %p193 = por %p191, %p192
      %p195 = scmp.ne.s32.totalorder %s180, %s194
      %p196 = scmp.eq.s32.totalorder %s23, 0
      %p197 = por %p195, %p196
      %s198 = ssub.s32 %s17, %s24
      %p199 = scmp.eq.s32.totalorder %s198, 0
      %s201 = sadd.s32 %s200, 1
      %s202 = scalar_select %p199, %s200, %s201
      %p205 = pneg %p199
      %p206 = scmp.eq.s32.totalorder %s17, 1
      %p207 = por %p205, %p206
      %p208 = scmp.ne.s32.totalorder %s200, %s203
      %p209 = scmp.eq.s32.totalorder %s17, 0
      %p210 = por %p208, %p209
      %p211 = scmp.ne.s32.totalorder %s200, %s203
      %p212 = scmp.eq.s32.totalorder %s22, 1
      %p213 = por %p211, %p212
      %p214 = scmp.ne.s32.totalorder %s203, %s204
      %p215 = scmp.eq.s32.totalorder %s22, 0
      %p216 = por %p214, %p215
      %p217 = scmp.ne.s32.totalorder %s203, %s204
      %p218 = scmp.eq.s32.totalorder %s23, 1
      %p219 = por %p217, %p218
      %p221 = scmp.ne.s32.totalorder %s204, %s220
      %p222 = scmp.eq.s32.totalorder %s23, 0
      %p223 = por %p221, %p222
      %p224 = scmp.le.s32.totalorder 1, %s17
      %p225 = scmp.lt.s32.totalorder %s17, 3
      %p226 = pnand %p224, %p225
      %p227 = pneg %p226
      // Predicated region
      $region9: #{tpu_custom_call.1} parent=5 // pred_check
        _
      $region10: #{tpu_custom_call.1} parent=5 // pred_check_branch
        %229 = sbr.rel (%p226) target = $region12
      $region11: #{tpu_custom_call.1} parent=5 // pred_region
        %s230 = ssub.s32 %s17, 1
        // Predicated region
        $region13: #{tpu_custom_call.1} parent=11 // pred_check
          %p231 = pneg %p64
        $region14: #{tpu_custom_call.1} parent=11 // pred_check_branch
          %233 = sbr.rel (%p231) target = $region16
        $region15: #{tpu_custom_call.1} parent=11 // pred_region
          _
        $region16: #{tpu_custom_call.1} parent=11 // pred_fallthru
          _
        // Predicated region
        $region17: #{tpu_custom_call.1} parent=11 // pred_check
          %p234 = pneg %p85
        $region18: #{tpu_custom_call.1} parent=11 // pred_check_branch
          %236 = sbr.rel (%p234) target = $region20
        $region19: #{tpu_custom_call.1} parent=11 // pred_region
          _
        $region20: #{tpu_custom_call.1} parent=11 // pred_fallthru
          _
        // Predicated region
        $region21: #{tpu_custom_call.1} parent=11 // pred_check
          %p237 = pneg %p106
        $region22: #{tpu_custom_call.1} parent=11 // pred_check_branch
          %239 = sbr.rel (%p237) target = $region24
        $region23: #{tpu_custom_call.1} parent=11 // pred_region
          _
        $region24: #{tpu_custom_call.1} parent=11 // pred_fallthru
          _
        // Predicated region
        $region25: #{tpu_custom_call.1} parent=11 // pred_check
          %p240 = pneg %p127
        $region26: #{tpu_custom_call.1} parent=11 // pred_check_branch
          %242 = sbr.rel (%p240) target = $region28
        $region27: #{tpu_custom_call.1} parent=11 // pred_region
          _
        $region28: #{tpu_custom_call.1} parent=11 // pred_fallthru
          _
        // Predicated region
        $region29: #{tpu_custom_call.1} parent=11 // pred_check
          %p243 = pneg %p148
        $region30: #{tpu_custom_call.1} parent=11 // pred_check_branch
          %245 = sbr.rel (%p243) target = $region32
        $region31: #{tpu_custom_call.1} parent=11 // pred_region
          _
        $region32: #{tpu_custom_call.1} parent=11 // pred_fallthru
          _
        // Predicated region
        $region33: #{tpu_custom_call.1} parent=11 // pred_check
          %p246 = pneg %p169
        $region34: #{tpu_custom_call.1} parent=11 // pred_check_branch
          %248 = sbr.rel (%p246) target = $region36
        $region35: #{tpu_custom_call.1} parent=11 // pred_region
          _
        $region36: #{tpu_custom_call.1} parent=11 // pred_fallthru
          _
        // Predicated region
        $region37: #{tpu_custom_call.1} parent=11 // pred_check
          %p249 = pneg %p190
        $region38: #{tpu_custom_call.1} parent=11 // pred_check_branch
          %251 = sbr.rel (%p249) target = $region40
        $region39: #{tpu_custom_call.1} parent=11 // pred_region
          _
        $region40: #{tpu_custom_call.1} parent=11 // pred_fallthru
          _
      $region12: #{tpu_custom_call.1} parent=5 // pred_fallthru
        _
      %p252 = scmp.lt.s32.totalorder %s17, 2
      // Predicated region
      $region41: #{tpu_custom_call.1} parent=5 // pred_check
        %p253 = pneg %p252
      $region42: #{tpu_custom_call.1} parent=5 // pred_check_branch
        %255 = sbr.rel (%p253) target = $region44
      $region43: #{tpu_custom_call.1} parent=5 // pred_region
        // Predicated region
        $region45: #{tpu_custom_call.1} parent=43 // pred_check
          %p256 = pneg %p37
        $region46: #{tpu_custom_call.1} parent=43 // pred_check_branch
          %258 = sbr.rel (%p256) target = $region48
        $region47: #{tpu_custom_call.1} parent=43 // pred_region
          %p259 = scmp.lt.s32.totalorder %s17, 1
          %s260 = scalar_select %p259, %s17, 1
          %s261 = smul.addr %s260, 2
          %s262 = smul.addr %s261, 4
          %s263 = scalar_lea.vmem %s0, %s262
        $region48: #{tpu_custom_call.1} parent=43 // pred_fallthru
          _
      $region44: #{tpu_custom_call.1} parent=5 // pred_fallthru
        _
      %p264 = scmp.le.s32.totalorder 1, %s17
      %p265 = scmp.lt.s32.totalorder %s17, 3
      %p266 = pnand %p264, %p265
      %p267 = pneg %p266
      // Predicated region
      $region49: #{tpu_custom_call.1} parent=5 // pred_check
        _
      $region50: #{tpu_custom_call.1} parent=5 // pred_check_branch
        %269 = sbr.rel (%p266) target = $region52
      $region51: #{tpu_custom_call.1} parent=5 // pred_region
        %s270 = ssub.s32 %s17, 1
        %p271 = scmp.lt.s32.totalorder %s22, 1
        %s272 = scalar_select %p271, %s22, 1
        %s273 = smul.addr %s272, 2
        %s274 = smul.addr %s273, 4
        %s275 = scalar_lea.vmem %s0, %s274
        %p276 = pneg %p43
        %p277 = pneg %p40
        %p278 = pneg %p64
        %p279 = pneg %p61
        %p280 = pneg %p85
        %p281 = pneg %p82
        %p282 = pneg %p106
        %p283 = pneg %p103
        %p284 = pneg %p127
        %p285 = pneg %p124
        %p286 = pneg %p148
        %p287 = pneg %p145
        %p288 = pneg %p169
        %p289 = pneg %p166
        %p290 = pneg %p190
        %p291 = pneg %p187
        %p292 = pneg %p216
        %p293 = pneg %p213
        %s294 = sand.u32 %s203, 1
        %s295 = scalar_lea.sflag [#allocation3], %s294
        %s296 = sand.u32 %s203, 1
        %s297 = smul.addr %s296, 8
        %s298 = scalar_lea.vmem [#allocation2], %s297
        %p299 = scmp.lt.s32.totalorder %s22, 1
        %s300 = scalar_select %p299, %s22, 1
        %s301 = smul.addr %s300, 2
        %s302 = smul.addr %s301, 4
        %s303 = scalar_lea.vmem %s0, %s302
        %v304 = vld [vmem:[%s303] sm:$0xff]
        %v306 = vcombine.high %v304, %v304
        %307 = vrot.lane.b32.xlu0 %v304, 17
        %v308 = vpop.permute.xlu0 %307
        %309 = vrot.lane.b32.xlu0 %v306, 17
        %v310 = vpop.permute.xlu0 %309
        %vm311 = vcmask 138240
        %v312 = vsel %vm311, %v308, %v310
        %v316 = vsel %vm311, 0.0, %v308
        %v317 = vsel %vm311, %v310, 0.0
        %v318 = vld [vmem:[%s1] sm:$0x3]
        %v320 = vlaneseq
        %v321 = vshrl.u32 %v320, 7
        %v322 = vsub.s32 0, %v321
        %v323 = vrot.slane %v318, %v322
        %v324 = vlaneseq
        %v325 = vshrl.u32 %v324, 7
        %v326 = vsub.s32 1, %v325
        %v327 = vrot.slane %v318, %v326
        %v330 = vmul.f32 %v316, %v323
        %v331 = vmul.f32 %v312, %v327
        %v332 = vld [vmem:[%s2] sm:$0xf]
        %s333 = scalar_lea.vmem %s2, 4
        %v334 = vld [vmem:[%s333] sm:$0xf]
        %337 = vrot.lane.b32.xlu0 %v316, 127
        %v338 = vpop.permute.xlu0 %337
        %339 = vrot.lane.b32.xlu0 %v312, 127
        %v340 = vpop.permute.xlu0 %339
        %341 = vrot.lane.b32.xlu0 %v317, 127
        %v342 = vpop.permute.xlu0 %341
        %vm343 = vcmask 1039360
        %v344 = vsel %vm343, %v338, %v340
        %v345 = vsel %vm343, %v340, %v342
        %vm346 = vcmask 31744
        %v348 = vsel %vm346, %v334, 0
        %vm350 = vcmask 1043456
        %v351 = vsel %vm350, %v344, 0
        %v353 = vsel %vm350, %v345, 0
        %355 = vmatprep.subr.mxu0 0.0
        %356 = vmatpush1.msra.mxu0 0.0
        %357 = vmatprep.subr.mxu0 0.0
        %358 = vmatpush1.msra.mxu0 0.0
        %359 = vmatprep.subr.mxu0 0.0
        %360 = vmatpush1.msra.mxu0 0.0
        %361 = vmatprep.subr.mxu0 0.0
        %362 = vmatpush1.msra.mxu0 0.0
        %363 = vmatprep.subr.mxu0 0.0
        %364 = vmatpush1.msra.mxu0 0.0
        %365 = vmatprep.subr.mxu0 0.0
        %366 = vmatpush1.msra.mxu0 0.0
        %367 = vmatprep.subr.mxu0 0.0
        %368 = vmatpush1.msra.mxu0 0.0
        %369 = vmatprep.subr.mxu0 0.0
        %370 = vmatpush1.msra.mxu0 0.0
        %371 = vmatprep.subr.mxu0 0.0
        %372 = vmatpush1.msra.mxu0 0.0
        %373 = vmatprep.subr.mxu0 0.0
        %374 = vmatpush1.msra.mxu0 0.0
        %375 = vmatprep.subr.mxu0 0.0
        %376 = vmatpush1.msra.mxu0 0.0
        %377 = vmatprep.subr.mxu0 0.0
        %378 = vmatpush1.msra.mxu0 0.0
        %379 = vmatprep.subr.mxu0 0.0
        %380 = vmatpush1.msra.mxu0 0.0
        %381 = vmatprep.subr.mxu0 0.0
        %382 = vmatpush1.msra.mxu0 0.0
        %383 = vmatprep.subr.mxu0 0.0
        %384 = vmatpush1.msra.mxu0 0.0
        %385 = vmatprep.subr.mxu0 %v353
        %386 = vmatpush1.msra.mxu0 %v351
        %387 = vmatprep.subr.mxu0 0.0
        %388 = vmatpush2.msra.mxu0 0.0
        %389 = vmatprep.subr.mxu0 0.0
        %390 = vmatpush2.msra.mxu0 0.0
        %391 = vmatprep.subr.mxu0 0.0
        %392 = vmatpush2.msra.mxu0 0.0
        %393 = vmatprep.subr.mxu0 0.0
        %394 = vmatpush2.msra.mxu0 0.0
        %395 = vmatprep.subr.mxu0 0.0
        %396 = vmatpush2.msra.mxu0 0.0
        %397 = vmatprep.subr.mxu0 0.0
        %398 = vmatpush2.msra.mxu0 0.0
        %399 = vmatprep.subr.mxu0 0.0
        %400 = vmatpush2.msra.mxu0 0.0
        %401 = vmatprep.subr.mxu0 0.0
        %402 = vmatpush2.msra.mxu0 0.0
        %403 = vmatprep.subr.mxu0 0.0
        %404 = vmatpush2.msra.mxu0 0.0
        %405 = vmatprep.subr.mxu0 0.0
        %406 = vmatpush2.msra.mxu0 0.0
        %407 = vmatprep.subr.mxu0 0.0
        %408 = vmatpush2.msra.mxu0 0.0
        %409 = vmatprep.subr.mxu0 0.0
        %410 = vmatpush2.msra.mxu0 0.0
        %411 = vmatprep.subr.mxu0 0.0
        %412 = vmatpush2.msra.mxu0 0.0
        %413 = vmatprep.subr.mxu0 0.0
        %414 = vmatpush2.msra.mxu0 0.0
        %415 = vmatprep.subr.mxu0 0.0
        %416 = vmatpush2.msra.mxu0 0.0
        %417 = vmatprep.subr.mxu0 0.0
        %418 = vmatpush2.msra.mxu0 0.0
        %419 = vmatprep.mubr.f32.mxu0 0.0
        %420 = vmatmul.mubr.f32.gmra.mxu0 %v348
        %v421 = vpop.f32.mrf.mxu0
        %v422 = vadd.f32 0.0, %v421
        %v423 = vpop.f32.mrf.mxu0
        %v424 = vadd.f32 0.0, %v423
        %425 = vdwg.mxu0
        %v427 = vsel %vm346, %v332, 0
        %v430 = vsel %vm350, %v330, 0
        %v433 = vsel %vm350, %v331, 0
        %435 = vmatprep.subr.mxu0 0.0
        %436 = vmatpush1.msra.mxu0 0.0
        %437 = vmatprep.subr.mxu0 0.0
        %438 = vmatpush1.msra.mxu0 0.0
        %439 = vmatprep.subr.mxu0 0.0
        %440 = vmatpush1.msra.mxu0 0.0
        %441 = vmatprep.subr.mxu0 0.0
        %442 = vmatpush1.msra.mxu0 0.0
        %443 = vmatprep.subr.mxu0 0.0
        %444 = vmatpush1.msra.mxu0 0.0
        %445 = vmatprep.subr.mxu0 0.0
        %446 = vmatpush1.msra.mxu0 0.0
        %447 = vmatprep.subr.mxu0 0.0
        %448 = vmatpush1.msra.mxu0 0.0
        %449 = vmatprep.subr.mxu0 0.0
        %450 = vmatpush1.msra.mxu0 0.0
        %451 = vmatprep.subr.mxu0 0.0
        %452 = vmatpush1.msra.mxu0 0.0
        %453 = vmatprep.subr.mxu0 0.0
        %454 = vmatpush1.msra.mxu0 0.0
        %455 = vmatprep.subr.mxu0 0.0
        %456 = vmatpush1.msra.mxu0 0.0
        %457 = vmatprep.subr.mxu0 0.0
        %458 = vmatpush1.msra.mxu0 0.0
        %459 = vmatprep.subr.mxu0 0.0
        %460 = vmatpush1.msra.mxu0 0.0
        %461 = vmatprep.subr.mxu0 0.0
        %462 = vmatpush1.msra.mxu0 0.0
        %463 = vmatprep.subr.mxu0 0.0
        %464 = vmatpush1.msra.mxu0 0.0
        %465 = vmatprep.subr.mxu0 %v433
        %466 = vmatpush1.msra.mxu0 %v430
        %467 = vmatprep.subr.mxu0 0.0
        %468 = vmatpush2.msra.mxu0 0.0
        %469 = vmatprep.subr.mxu0 0.0
        %470 = vmatpush2.msra.mxu0 0.0
        %471 = vmatprep.subr.mxu0 0.0
        %472 = vmatpush2.msra.mxu0 0.0
        %473 = vmatprep.subr.mxu0 0.0
        %474 = vmatpush2.msra.mxu0 0.0
        %475 = vmatprep.subr.mxu0 0.0
        %476 = vmatpush2.msra.mxu0 0.0
        %477 = vmatprep.subr.mxu0 0.0
        %478 = vmatpush2.msra.mxu0 0.0
        %479 = vmatprep.subr.mxu0 0.0
        %480 = vmatpush2.msra.mxu0 0.0
        %481 = vmatprep.subr.mxu0 0.0
        %482 = vmatpush2.msra.mxu0 0.0
        %483 = vmatprep.subr.mxu0 0.0
        %484 = vmatpush2.msra.mxu0 0.0
        %485 = vmatprep.subr.mxu0 0.0
        %486 = vmatpush2.msra.mxu0 0.0
        %487 = vmatprep.subr.mxu0 0.0
        %488 = vmatpush2.msra.mxu0 0.0
        %489 = vmatprep.subr.mxu0 0.0
        %490 = vmatpush2.msra.mxu0 0.0
        %491 = vmatprep.subr.mxu0 0.0
        %492 = vmatpush2.msra.mxu0 0.0
        %493 = vmatprep.subr.mxu0 0.0
        %494 = vmatpush2.msra.mxu0 0.0
        %495 = vmatprep.subr.mxu0 0.0
        %496 = vmatpush2.msra.mxu0 0.0
        %497 = vmatprep.subr.mxu0 0.0
        %498 = vmatpush2.msra.mxu0 0.0
        %499 = vmatprep.mubr.f32.mxu0 0.0
        %500 = vmatmul.mubr.f32.gmra.mxu0 %v427
        %v501 = vpop.f32.mrf.mxu0
        %v502 = vadd.f32 %v422, %v501
        %v503 = vpop.f32.mrf.mxu0
        %v504 = vadd.f32 %v424, %v503
        %505 = vdwg.mxu0
        %s506 = scalar_lea.vmem %s1, 4
        %v507 = vld [vmem:[%s506] sm:$0x3]
        %v509 = vlaneseq
        %v510 = vshrl.u32 %v509, 7
        %v511 = vsub.s32 0, %v510
        %v512 = vrot.slane %v507, %v511
        %v513 = vlaneseq
        %v514 = vshrl.u32 %v513, 7
        %v515 = vsub.s32 1, %v514
        %v516 = vrot.slane %v507, %v515
        %517 = vrot.lane.b32.xlu0 %v512, 2
        %v518 = vpop.permute.xlu0 %517
        %519 = vrot.lane.b32.xlu0 %v516, 2
        %v520 = vpop.permute.xlu0 %519
        %vm521 = vcmask 15360
        %v522 = vsel %vm521, %v518, %v520
        %v526 = vmul.f32 %v316, %v518
        %v527 = vmul.f32 %v312, %v522
        %v528 = vmul.f32 %v317, %v520
        %s529 = scalar_lea.vmem %s2, 8
        %v530 = vld [vmem:[%s529] sm:$0xf]
        %534 = vrot.lane.b32.xlu0 %v526, 126
        %v535 = vpop.permute.xlu0 %534
        %536 = vrot.lane.b32.xlu0 %v527, 126
        %v537 = vpop.permute.xlu0 %536
        %538 = vrot.lane.b32.xlu0 %v528, 126
        %v539 = vpop.permute.xlu0 %538
        %vm540 = vcmask 1031168
        %v541 = vsel %vm540, %v535, %v537
        %v542 = vsel %vm540, %v537, %v539
        %v544 = vsel %vm346, %v530, 0
        %v546 = vsel %vm350, %v541, 0
        %v548 = vsel %vm350, %v542, 0
        %550 = vmatprep.subr.mxu0 0.0
        %551 = vmatpush1.msra.mxu0 0.0
        %552 = vmatprep.subr.mxu0 0.0
        %553 = vmatpush1.msra.mxu0 0.0
        %554 = vmatprep.subr.mxu0 0.0
        %555 = vmatpush1.msra.mxu0 0.0
        %556 = vmatprep.subr.mxu0 0.0
        %557 = vmatpush1.msra.mxu0 0.0
        %558 = vmatprep.subr.mxu0 0.0
        %559 = vmatpush1.msra.mxu0 0.0
        %560 = vmatprep.subr.mxu0 0.0
        %561 = vmatpush1.msra.mxu0 0.0
        %562 = vmatprep.subr.mxu0 0.0
        %563 = vmatpush1.msra.mxu0 0.0
        %564 = vmatprep.subr.mxu0 0.0
        %565 = vmatpush1.msra.mxu0 0.0
        %566 = vmatprep.subr.mxu0 0.0
        %567 = vmatpush1.msra.mxu0 0.0
        %568 = vmatprep.subr.mxu0 0.0
        %569 = vmatpush1.msra.mxu0 0.0
        %570 = vmatprep.subr.mxu0 0.0
        %571 = vmatpush1.msra.mxu0 0.0
        %572 = vmatprep.subr.mxu0 0.0
        %573 = vmatpush1.msra.mxu0 0.0
        %574 = vmatprep.subr.mxu0 0.0
        %575 = vmatpush1.msra.mxu0 0.0
        %576 = vmatprep.subr.mxu0 0.0
        %577 = vmatpush1.msra.mxu0 0.0
        %578 = vmatprep.subr.mxu0 0.0
        %579 = vmatpush1.msra.mxu0 0.0
        %580 = vmatprep.subr.mxu0 %v548
        %581 = vmatpush1.msra.mxu0 %v546
        %582 = vmatprep.subr.mxu0 0.0
        %583 = vmatpush2.msra.mxu0 0.0
        %584 = vmatprep.subr.mxu0 0.0
        %585 = vmatpush2.msra.mxu0 0.0
        %586 = vmatprep.subr.mxu0 0.0
        %587 = vmatpush2.msra.mxu0 0.0
        %588 = vmatprep.subr.mxu0 0.0
        %589 = vmatpush2.msra.mxu0 0.0
        %590 = vmatprep.subr.mxu0 0.0
        %591 = vmatpush2.msra.mxu0 0.0
        %592 = vmatprep.subr.mxu0 0.0
        %593 = vmatpush2.msra.mxu0 0.0
        %594 = vmatprep.subr.mxu0 0.0
        %595 = vmatpush2.msra.mxu0 0.0
        %596 = vmatprep.subr.mxu0 0.0
        %597 = vmatpush2.msra.mxu0 0.0
        %598 = vmatprep.subr.mxu0 0.0
        %599 = vmatpush2.msra.mxu0 0.0
        %600 = vmatprep.subr.mxu0 0.0
        %601 = vmatpush2.msra.mxu0 0.0
        %602 = vmatprep.subr.mxu0 0.0
        %603 = vmatpush2.msra.mxu0 0.0
        %604 = vmatprep.subr.mxu0 0.0
        %605 = vmatpush2.msra.mxu0 0.0
        %606 = vmatprep.subr.mxu0 0.0
        %607 = vmatpush2.msra.mxu0 0.0
        %608 = vmatprep.subr.mxu0 0.0
        %609 = vmatpush2.msra.mxu0 0.0
        %610 = vmatprep.subr.mxu0 0.0
        %611 = vmatpush2.msra.mxu0 0.0
        %612 = vmatprep.subr.mxu0 0.0
        %613 = vmatpush2.msra.mxu0 0.0
        %614 = vmatprep.mubr.f32.mxu0 0.0
        %615 = vmatmul.mubr.f32.gmra.mxu0 %v544
        %v616 = vpop.f32.mrf.mxu0
        %v617 = vadd.f32 0.0, %v616
        %v618 = vpop.f32.mrf.mxu0
        %v619 = vadd.f32 0.0, %v618
        %620 = vdwg.mxu0
        %v621 = vadd.f32 %v502, %v617
        %v622 = vadd.f32 %v504, %v619
        %623 = vrot.lane.b32.xlu0 %v323, 16
        %v624 = vpop.permute.xlu0 %623
        %625 = vrot.lane.b32.xlu0 %v327, 16
        %v626 = vpop.permute.xlu0 %625
        %vm627 = vcmask 130048
        %v628 = vsel %vm627, %v624, %v626
        %v632 = vmul.f32 %v316, %v624
        %v633 = vmul.f32 %v312, %v628
        %v634 = vmul.f32 %v317, %v626
        %s635 = scalar_lea.vmem %s2, 12
        %v636 = vld [vmem:[%s635] sm:$0xf]
        %640 = vrot.lane.b32.xlu0 %v632, 112
        %v641 = vpop.permute.xlu0 %640
        %642 = vrot.lane.b32.xlu0 %v633, 112
        %v643 = vpop.permute.xlu0 %642
        %644 = vrot.lane.b32.xlu0 %v634, 112
        %v645 = vpop.permute.xlu0 %644
        %vm646 = vcmask 916480
        %v647 = vsel %vm646, %v641, %v643
        %v648 = vsel %vm646, %v643, %v645
        %v650 = vsel %vm346, %v636, 0
        %v652 = vsel %vm350, %v647, 0
        %v654 = vsel %vm350, %v648, 0
        %656 = vmatprep.subr.mxu0 0.0
        %657 = vmatpush1.msra.mxu0 0.0
        %658 = vmatprep.subr.mxu0 0.0
        %659 = vmatpush1.msra.mxu0 0.0
        %660 = vmatprep.subr.mxu0 0.0
        %661 = vmatpush1.msra.mxu0 0.0
        %662 = vmatprep.subr.mxu0 0.0
        %663 = vmatpush1.msra.mxu0 0.0
        %664 = vmatprep.subr.mxu0 0.0
        %665 = vmatpush1.msra.mxu0 0.0
        %666 = vmatprep.subr.mxu0 0.0
        %667 = vmatpush1.msra.mxu0 0.0
        %668 = vmatprep.subr.mxu0 0.0
        %669 = vmatpush1.msra.mxu0 0.0
        %670 = vmatprep.subr.mxu0 0.0
        %671 = vmatpush1.msra.mxu0 0.0
        %672 = vmatprep.subr.mxu0 0.0
        %673 = vmatpush1.msra.mxu0 0.0
        %674 = vmatprep.subr.mxu0 0.0
        %675 = vmatpush1.msra.mxu0 0.0
        %676 = vmatprep.subr.mxu0 0.0
        %677 = vmatpush1.msra.mxu0 0.0
        %678 = vmatprep.subr.mxu0 0.0
        %679 = vmatpush1.msra.mxu0 0.0
        %680 = vmatprep.subr.mxu0 0.0
        %681 = vmatpush1.msra.mxu0 0.0
        %682 = vmatprep.subr.mxu0 0.0
        %683 = vmatpush1.msra.mxu0 0.0
        %684 = vmatprep.subr.mxu0 0.0
        %685 = vmatpush1.msra.mxu0 0.0
        %686 = vmatprep.subr.mxu0 %v654
        %687 = vmatpush1.msra.mxu0 %v652
        %688 = vmatprep.subr.mxu0 0.0
        %689 = vmatpush2.msra.mxu0 0.0
        %690 = vmatprep.subr.mxu0 0.0
        %691 = vmatpush2.msra.mxu0 0.0
        %692 = vmatprep.subr.mxu0 0.0
        %693 = vmatpush2.msra.mxu0 0.0
        %694 = vmatprep.subr.mxu0 0.0
        %695 = vmatpush2.msra.mxu0 0.0
        %696 = vmatprep.subr.mxu0 0.0
        %697 = vmatpush2.msra.mxu0 0.0
        %698 = vmatprep.subr.mxu0 0.0
        %699 = vmatpush2.msra.mxu0 0.0
        %700 = vmatprep.subr.mxu0 0.0
        %701 = vmatpush2.msra.mxu0 0.0
        %702 = vmatprep.subr.mxu0 0.0
        %703 = vmatpush2.msra.mxu0 0.0
        %704 = vmatprep.subr.mxu0 0.0
        %705 = vmatpush2.msra.mxu0 0.0
        %706 = vmatprep.subr.mxu0 0.0
        %707 = vmatpush2.msra.mxu0 0.0
        %708 = vmatprep.subr.mxu0 0.0
        %709 = vmatpush2.msra.mxu0 0.0
        %710 = vmatprep.subr.mxu0 0.0
        %711 = vmatpush2.msra.mxu0 0.0
        %712 = vmatprep.subr.mxu0 0.0
        %713 = vmatpush2.msra.mxu0 0.0
        %714 = vmatprep.subr.mxu0 0.0
        %715 = vmatpush2.msra.mxu0 0.0
        %716 = vmatprep.subr.mxu0 0.0
        %717 = vmatpush2.msra.mxu0 0.0
        %718 = vmatprep.subr.mxu0 0.0
        %719 = vmatpush2.msra.mxu0 0.0
        %720 = vmatprep.mubr.f32.mxu0 0.0
        %721 = vmatmul.mubr.f32.gmra.mxu0 %v650
        %v722 = vpop.f32.mrf.mxu0
        %v723 = vadd.f32 0.0, %v722
        %v724 = vpop.f32.mrf.mxu0
        %v725 = vadd.f32 0.0, %v724
        %726 = vdwg.mxu0
        %v727 = vadd.f32 %v621, %v723
        %v728 = vadd.f32 %v622, %v725
        %s729 = scalar_lea.vmem %s2, 16
        %v730 = vld [vmem:[%s729] sm:$0xf]
        %731 = vrot.lane.b32.xlu0 %v316, 111
        %v732 = vpop.permute.xlu0 %731
        %733 = vrot.lane.b32.xlu0 %v312, 111
        %v734 = vpop.permute.xlu0 %733
        %735 = vrot.lane.b32.xlu0 %v317, 111
        %v736 = vpop.permute.xlu0 %735
        %vm737 = vcmask 908288
        %v738 = vsel %vm737, %v732, %v734
        %v739 = vsel %vm737, %v734, %v736
        %v741 = vsel %vm346, %v730, 0
        %v743 = vsel %vm350, %v738, 0
        %v745 = vsel %vm350, %v739, 0
        %747 = vmatprep.subr.mxu0 0.0
        %748 = vmatpush1.msra.mxu0 0.0
        %749 = vmatprep.subr.mxu0 0.0
        %750 = vmatpush1.msra.mxu0 0.0
        %751 = vmatprep.subr.mxu0 0.0
        %752 = vmatpush1.msra.mxu0 0.0
        %753 = vmatprep.subr.mxu0 0.0
        %754 = vmatpush1.msra.mxu0 0.0
        %755 = vmatprep.subr.mxu0 0.0
        %756 = vmatpush1.msra.mxu0 0.0
        %757 = vmatprep.subr.mxu0 0.0
        %758 = vmatpush1.msra.mxu0 0.0
        %759 = vmatprep.subr.mxu0 0.0
        %760 = vmatpush1.msra.mxu0 0.0
        %761 = vmatprep.subr.mxu0 0.0
        %762 = vmatpush1.msra.mxu0 0.0
        %763 = vmatprep.subr.mxu0 0.0
        %764 = vmatpush1.msra.mxu0 0.0
        %765 = vmatprep.subr.mxu0 0.0
        %766 = vmatpush1.msra.mxu0 0.0
        %767 = vmatprep.subr.mxu0 0.0
        %768 = vmatpush1.msra.mxu0 0.0
        %769 = vmatprep.subr.mxu0 0.0
        %770 = vmatpush1.msra.mxu0 0.0
        %771 = vmatprep.subr.mxu0 0.0
        %772 = vmatpush1.msra.mxu0 0.0
        %773 = vmatprep.subr.mxu0 0.0
        %774 = vmatpush1.msra.mxu0 0.0
        %775 = vmatprep.subr.mxu0 0.0
        %776 = vmatpush1.msra.mxu0 0.0
        %777 = vmatprep.subr.mxu0 %v745
        %778 = vmatpush1.msra.mxu0 %v743
        %779 = vmatprep.subr.mxu0 0.0
        %780 = vmatpush2.msra.mxu0 0.0
        %781 = vmatprep.subr.mxu0 0.0
        %782 = vmatpush2.msra.mxu0 0.0
        %783 = vmatprep.subr.mxu0 0.0
        %784 = vmatpush2.msra.mxu0 0.0
        %785 = vmatprep.subr.mxu0 0.0
        %786 = vmatpush2.msra.mxu0 0.0
        %787 = vmatprep.subr.mxu0 0.0
        %788 = vmatpush2.msra.mxu0 0.0
        %789 = vmatprep.subr.mxu0 0.0
        %790 = vmatpush2.msra.mxu0 0.0
        %791 = vmatprep.subr.mxu0 0.0
        %792 = vmatpush2.msra.mxu0 0.0
        %793 = vmatprep.subr.mxu0 0.0
        %794 = vmatpush2.msra.mxu0 0.0
        %795 = vmatprep.subr.mxu0 0.0
        %796 = vmatpush2.msra.mxu0 0.0
        %797 = vmatprep.subr.mxu0 0.0
        %798 = vmatpush2.msra.mxu0 0.0
        %799 = vmatprep.subr.mxu0 0.0
        %800 = vmatpush2.msra.mxu0 0.0
        %801 = vmatprep.subr.mxu0 0.0
        %802 = vmatpush2.msra.mxu0 0.0
        %803 = vmatprep.subr.mxu0 0.0
        %804 = vmatpush2.msra.mxu0 0.0
        %805 = vmatprep.subr.mxu0 0.0
        %806 = vmatpush2.msra.mxu0 0.0
        %807 = vmatprep.subr.mxu0 0.0
        %808 = vmatpush2.msra.mxu0 0.0
        %809 = vmatprep.subr.mxu0 0.0
        %810 = vmatpush2.msra.mxu0 0.0
        %811 = vmatprep.mubr.f32.mxu0 0.0
        %812 = vmatmul.mubr.f32.gmra.mxu0 %v741
        %v813 = vpop.f32.mrf.mxu0
        %v814 = vadd.f32 0.0, %v813
        %v815 = vpop.f32.mrf.mxu0
        %v816 = vadd.f32 0.0, %v815
        %817 = vdwg.mxu0
        %v818 = vadd.f32 %v727, %v814
        %v819 = vadd.f32 %v728, %v816
        %820 = vrot.lane.b32.xlu0 %v512, 18
        %v821 = vpop.permute.xlu0 %820
        %822 = vrot.lane.b32.xlu0 %v516, 18
        %v823 = vpop.permute.xlu0 %822
        %vm824 = vcmask 146432
        %v825 = vsel %vm824, %v821, %v823
        %v829 = vmul.f32 %v316, %v821
        %v830 = vmul.f32 %v312, %v825
        %v831 = vmul.f32 %v317, %v823
        %s832 = scalar_lea.vmem %s2, 20
        %v833 = vld [vmem:[%s832] sm:$0xf]
        %837 = vrot.lane.b32.xlu0 %v829, 110
        %v838 = vpop.permute.xlu0 %837
        %839 = vrot.lane.b32.xlu0 %v830, 110
        %v840 = vpop.permute.xlu0 %839
        %841 = vrot.lane.b32.xlu0 %v831, 110
        %v842 = vpop.permute.xlu0 %841
        %vm843 = vcmask 900096
        %v844 = vsel %vm843, %v838, %v840
        %v845 = vsel %vm843, %v840, %v842
        %v847 = vsel %vm346, %v833, 0
        %v849 = vsel %vm350, %v844, 0
        %v851 = vsel %vm350, %v845, 0
        %853 = vmatprep.subr.mxu0 0.0
        %854 = vmatpush1.msra.mxu0 0.0
        %855 = vmatprep.subr.mxu0 0.0
        %856 = vmatpush1.msra.mxu0 0.0
        %857 = vmatprep.subr.mxu0 0.0
        %858 = vmatpush1.msra.mxu0 0.0
        %859 = vmatprep.subr.mxu0 0.0
        %860 = vmatpush1.msra.mxu0 0.0
        %861 = vmatprep.subr.mxu0 0.0
        %862 = vmatpush1.msra.mxu0 0.0
        %863 = vmatprep.subr.mxu0 0.0
        %864 = vmatpush1.msra.mxu0 0.0
        %865 = vmatprep.subr.mxu0 0.0
        %866 = vmatpush1.msra.mxu0 0.0
        %867 = vmatprep.subr.mxu0 0.0
        %868 = vmatpush1.msra.mxu0 0.0
        %869 = vmatprep.subr.mxu0 0.0
        %870 = vmatpush1.msra.mxu0 0.0
        %871 = vmatprep.subr.mxu0 0.0
        %872 = vmatpush1.msra.mxu0 0.0
        %873 = vmatprep.subr.mxu0 0.0
        %874 = vmatpush1.msra.mxu0 0.0
        %875 = vmatprep.subr.mxu0 0.0
        %876 = vmatpush1.msra.mxu0 0.0
        %877 = vmatprep.subr.mxu0 0.0
        %878 = vmatpush1.msra.mxu0 0.0
        %879 = vmatprep.subr.mxu0 0.0
        %880 = vmatpush1.msra.mxu0 0.0
        %881 = vmatprep.subr.mxu0 0.0
        %882 = vmatpush1.msra.mxu0 0.0
        %883 = vmatprep.subr.mxu0 %v851
        %884 = vmatpush1.msra.mxu0 %v849
        %885 = vmatprep.subr.mxu0 0.0
        %886 = vmatpush2.msra.mxu0 0.0
        %887 = vmatprep.subr.mxu0 0.0
        %888 = vmatpush2.msra.mxu0 0.0
        %889 = vmatprep.subr.mxu0 0.0
        %890 = vmatpush2.msra.mxu0 0.0
        %891 = vmatprep.subr.mxu0 0.0
        %892 = vmatpush2.msra.mxu0 0.0
        %893 = vmatprep.subr.mxu0 0.0
        %894 = vmatpush2.msra.mxu0 0.0
        %895 = vmatprep.subr.mxu0 0.0
        %896 = vmatpush2.msra.mxu0 0.0
        %897 = vmatprep.subr.mxu0 0.0
        %898 = vmatpush2.msra.mxu0 0.0
        %899 = vmatprep.subr.mxu0 0.0
        %900 = vmatpush2.msra.mxu0 0.0
        %901 = vmatprep.subr.mxu0 0.0
        %902 = vmatpush2.msra.mxu0 0.0
        %903 = vmatprep.subr.mxu0 0.0
        %904 = vmatpush2.msra.mxu0 0.0
        %905 = vmatprep.subr.mxu0 0.0
        %906 = vmatpush2.msra.mxu0 0.0
        %907 = vmatprep.subr.mxu0 0.0
        %908 = vmatpush2.msra.mxu0 0.0
        %909 = vmatprep.subr.mxu0 0.0
        %910 = vmatpush2.msra.mxu0 0.0
        %911 = vmatprep.subr.mxu0 0.0
        %912 = vmatpush2.msra.mxu0 0.0
        %913 = vmatprep.subr.mxu0 0.0
        %914 = vmatpush2.msra.mxu0 0.0
        %915 = vmatprep.subr.mxu0 0.0
        %916 = vmatpush2.msra.mxu0 0.0
        %917 = vmatprep.mubr.f32.mxu0 0.0
        %918 = vmatmul.mubr.f32.gmra.mxu0 %v847
        %v919 = vpop.f32.mrf.mxu0
        %v920 = vadd.f32 0.0, %v919
        %v921 = vpop.f32.mrf.mxu0
        %v922 = vadd.f32 0.0, %v921
        %923 = vdwg.mxu0
        %v924 = vadd.f32 %v818, %v920
        %v925 = vadd.f32 %v819, %v922
        %926 = vrot.lane.b32.xlu0 %v323, 32
        %v927 = vpop.permute.xlu0 %926
        %928 = vrot.lane.b32.xlu0 %v327, 32
        %v929 = vpop.permute.xlu0 %928
        %vm930 = vcmask 261120
        %v931 = vsel %vm930, %v927, %v929
        %v935 = vmul.f32 %v316, %v927
        %v936 = vmul.f32 %v312, %v931
        %v937 = vmul.f32 %v317, %v929
        %s938 = scalar_lea.vmem %s2, 24
        %v939 = vld [vmem:[%s938] sm:$0xf]
        %943 = vrot.lane.b32.xlu0 %v935, 96
        %v944 = vpop.permute.xlu0 %943
        %945 = vrot.lane.b32.xlu0 %v936, 96
        %v946 = vpop.permute.xlu0 %945
        %947 = vrot.lane.b32.xlu0 %v937, 96
        %v948 = vpop.permute.xlu0 %947
        %vm949 = vcmask 785408
        %v950 = vsel %vm949, %v944, %v946
        %v951 = vsel %vm949, %v946, %v948
        %v953 = vsel %vm346, %v939, 0
        %v955 = vsel %vm350, %v950, 0
        %v957 = vsel %vm350, %v951, 0
        %959 = vmatprep.subr.mxu0 0.0
        %960 = vmatpush1.msra.mxu0 0.0
        %961 = vmatprep.subr.mxu0 0.0
        %962 = vmatpush1.msra.mxu0 0.0
        %963 = vmatprep.subr.mxu0 0.0
        %964 = vmatpush1.msra.mxu0 0.0
        %965 = vmatprep.subr.mxu0 0.0
        %966 = vmatpush1.msra.mxu0 0.0
        %967 = vmatprep.subr.mxu0 0.0
        %968 = vmatpush1.msra.mxu0 0.0
        %969 = vmatprep.subr.mxu0 0.0
        %970 = vmatpush1.msra.mxu0 0.0
        %971 = vmatprep.subr.mxu0 0.0
        %972 = vmatpush1.msra.mxu0 0.0
        %973 = vmatprep.subr.mxu0 0.0
        %974 = vmatpush1.msra.mxu0 0.0
        %975 = vmatprep.subr.mxu0 0.0
        %976 = vmatpush1.msra.mxu0 0.0
        %977 = vmatprep.subr.mxu0 0.0
        %978 = vmatpush1.msra.mxu0 0.0
        %979 = vmatprep.subr.mxu0 0.0
        %980 = vmatpush1.msra.mxu0 0.0
        %981 = vmatprep.subr.mxu0 0.0
        %982 = vmatpush1.msra.mxu0 0.0
        %983 = vmatprep.subr.mxu0 0.0
        %984 = vmatpush1.msra.mxu0 0.0
        %985 = vmatprep.subr.mxu0 0.0
        %986 = vmatpush1.msra.mxu0 0.0
        %987 = vmatprep.subr.mxu0 0.0
        %988 = vmatpush1.msra.mxu0 0.0
        %989 = vmatprep.subr.mxu0 %v957
        %990 = vmatpush1.msra.mxu0 %v955
        %991 = vmatprep.subr.mxu0 0.0
        %992 = vmatpush2.msra.mxu0 0.0
        %993 = vmatprep.subr.mxu0 0.0
        %994 = vmatpush2.msra.mxu0 0.0
        %995 = vmatprep.subr.mxu0 0.0
        %996 = vmatpush2.msra.mxu0 0.0
        %997 = vmatprep.subr.mxu0 0.0
        %998 = vmatpush2.msra.mxu0 0.0
        %999 = vmatprep.subr.mxu0 0.0
        %1000 = vmatpush2.msra.mxu0 0.0
        %1001 = vmatprep.subr.mxu0 0.0
        %1002 = vmatpush2.msra.mxu0 0.0
        %1003 = vmatprep.subr.mxu0 0.0
        %1004 = vmatpush2.msra.mxu0 0.0
        %1005 = vmatprep.subr.mxu0 0.0
        %1006 = vmatpush2.msra.mxu0 0.0
        %1007 = vmatprep.subr.mxu0 0.0
        %1008 = vmatpush2.msra.mxu0 0.0
        %1009 = vmatprep.subr.mxu0 0.0
        %1010 = vmatpush2.msra.mxu0 0.0
        %1011 = vmatprep.subr.mxu0 0.0
        %1012 = vmatpush2.msra.mxu0 0.0
        %1013 = vmatprep.subr.mxu0 0.0
        %1014 = vmatpush2.msra.mxu0 0.0
        %1015 = vmatprep.subr.mxu0 0.0
        %1016 = vmatpush2.msra.mxu0 0.0
        %1017 = vmatprep.subr.mxu0 0.0
        %1018 = vmatpush2.msra.mxu0 0.0
        %1019 = vmatprep.subr.mxu0 0.0
        %1020 = vmatpush2.msra.mxu0 0.0
        %1021 = vmatprep.subr.mxu0 0.0
        %1022 = vmatpush2.msra.mxu0 0.0
        %1023 = vmatprep.mubr.f32.mxu0 0.0
        %1024 = vmatmul.mubr.f32.gmra.mxu0 %v953
        %v1025 = vpop.f32.mrf.mxu0
        %v1026 = vadd.f32 0.0, %v1025
        %v1027 = vpop.f32.mrf.mxu0
        %v1028 = vadd.f32 0.0, %v1027
        %1029 = vdwg.mxu0
        %v1030 = vadd.f32 %v924, %v1026
        %v1031 = vadd.f32 %v925, %v1028
        %s1032 = scalar_lea.vmem %s2, 28
        %v1033 = vld [vmem:[%s1032] sm:$0xf]
        %1034 = vrot.lane.b32.xlu0 %v316, 95
        %v1035 = vpop.permute.xlu0 %1034
        %1036 = vrot.lane.b32.xlu0 %v312, 95
        %v1037 = vpop.permute.xlu0 %1036
        %1038 = vrot.lane.b32.xlu0 %v317, 95
        %v1039 = vpop.permute.xlu0 %1038
        %vm1040 = vcmask 777216
        %v1041 = vsel %vm1040, %v1035, %v1037
        %v1042 = vsel %vm1040, %v1037, %v1039
        %v1044 = vsel %vm346, %v1033, 0
        %v1046 = vsel %vm350, %v1041, 0
        %v1048 = vsel %vm350, %v1042, 0
        %1050 = vmatprep.subr.mxu0 0.0
        %1051 = vmatpush1.msra.mxu0 0.0
        %1052 = vmatprep.subr.mxu0 0.0
        %1053 = vmatpush1.msra.mxu0 0.0
        %1054 = vmatprep.subr.mxu0 0.0
        %1055 = vmatpush1.msra.mxu0 0.0
        %1056 = vmatprep.subr.mxu0 0.0
        %1057 = vmatpush1.msra.mxu0 0.0
        %1058 = vmatprep.subr.mxu0 0.0
        %1059 = vmatpush1.msra.mxu0 0.0
        %1060 = vmatprep.subr.mxu0 0.0
        %1061 = vmatpush1.msra.mxu0 0.0
        %1062 = vmatprep.subr.mxu0 0.0
        %1063 = vmatpush1.msra.mxu0 0.0
        %1064 = vmatprep.subr.mxu0 0.0
        %1065 = vmatpush1.msra.mxu0 0.0
        %1066 = vmatprep.subr.mxu0 0.0
        %1067 = vmatpush1.msra.mxu0 0.0
        %1068 = vmatprep.subr.mxu0 0.0
        %1069 = vmatpush1.msra.mxu0 0.0
        %1070 = vmatprep.subr.mxu0 0.0
        %1071 = vmatpush1.msra.mxu0 0.0
        %1072 = vmatprep.subr.mxu0 0.0
        %1073 = vmatpush1.msra.mxu0 0.0
        %1074 = vmatprep.subr.mxu0 0.0
        %1075 = vmatpush1.msra.mxu0 0.0
        %1076 = vmatprep.subr.mxu0 0.0
        %1077 = vmatpush1.msra.mxu0 0.0
        %1078 = vmatprep.subr.mxu0 0.0
        %1079 = vmatpush1.msra.mxu0 0.0
        %1080 = vmatprep.subr.mxu0 %v1048
        %1081 = vmatpush1.msra.mxu0 %v1046
        %1082 = vmatprep.subr.mxu0 0.0
        %1083 = vmatpush2.msra.mxu0 0.0
        %1084 = vmatprep.subr.mxu0 0.0
        %1085 = vmatpush2.msra.mxu0 0.0
        %1086 = vmatprep.subr.mxu0 0.0
        %1087 = vmatpush2.msra.mxu0 0.0
        %1088 = vmatprep.subr.mxu0 0.0
        %1089 = vmatpush2.msra.mxu0 0.0
        %1090 = vmatprep.subr.mxu0 0.0
        %1091 = vmatpush2.msra.mxu0 0.0
        %1092 = vmatprep.subr.mxu0 0.0
        %1093 = vmatpush2.msra.mxu0 0.0
        %1094 = vmatprep.subr.mxu0 0.0
        %1095 = vmatpush2.msra.mxu0 0.0
        %1096 = vmatprep.subr.mxu0 0.0
        %1097 = vmatpush2.msra.mxu0 0.0
        %1098 = vmatprep.subr.mxu0 0.0
        %1099 = vmatpush2.msra.mxu0 0.0
        %1100 = vmatprep.subr.mxu0 0.0
        %1101 = vmatpush2.msra.mxu0 0.0
        %1102 = vmatprep.subr.mxu0 0.0
        %1103 = vmatpush2.msra.mxu0 0.0
        %1104 = vmatprep.subr.mxu0 0.0
        %1105 = vmatpush2.msra.mxu0 0.0
        %1106 = vmatprep.subr.mxu0 0.0
        %1107 = vmatpush2.msra.mxu0 0.0
        %1108 = vmatprep.subr.mxu0 0.0
        %1109 = vmatpush2.msra.mxu0 0.0
        %1110 = vmatprep.subr.mxu0 0.0
        %1111 = vmatpush2.msra.mxu0 0.0
        %1112 = vmatprep.subr.mxu0 0.0
        %1113 = vmatpush2.msra.mxu0 0.0
        %1114 = vmatprep.mubr.f32.mxu0 0.0
        %1115 = vmatmul.mubr.f32.gmra.mxu0 %v1044
        %v1116 = vpop.f32.mrf.mxu0
        %v1117 = vadd.f32 0.0, %v1116
        %v1118 = vpop.f32.mrf.mxu0
        %v1119 = vadd.f32 0.0, %v1118
        %1120 = vdwg.mxu0
        %v1121 = vadd.f32 %v1030, %v1117
        %v1122 = vadd.f32 %v1031, %v1119
        %1123 = vrot.lane.b32.xlu0 %v512, 34
        %v1124 = vpop.permute.xlu0 %1123
        %1125 = vrot.lane.b32.xlu0 %v516, 34
        %v1126 = vpop.permute.xlu0 %1125
        %vm1127 = vcmask 277504
        %v1128 = vsel %vm1127, %v1124, %v1126
        %v1132 = vmul.f32 %v316, %v1124
        %v1133 = vmul.f32 %v312, %v1128
        %v1134 = vmul.f32 %v317, %v1126
        %s1135 = scalar_lea.vmem %s2, 32
        %v1136 = vld [vmem:[%s1135] sm:$0xf]
        %1140 = vrot.lane.b32.xlu0 %v1132, 94
        %v1141 = vpop.permute.xlu0 %1140
        %1142 = vrot.lane.b32.xlu0 %v1133, 94
        %v1143 = vpop.permute.xlu0 %1142
        %1144 = vrot.lane.b32.xlu0 %v1134, 94
        %v1145 = vpop.permute.xlu0 %1144
        %vm1146 = vcmask 769024
        %v1147 = vsel %vm1146, %v1141, %v1143
        %v1148 = vsel %vm1146, %v1143, %v1145
        %v1150 = vsel %vm346, %v1136, 0
        %v1152 = vsel %vm350, %v1147, 0
        %v1154 = vsel %vm350, %v1148, 0
        %1156 = vmatprep.subr.mxu0 0.0
        %1157 = vmatpush1.msra.mxu0 0.0
        %1158 = vmatprep.subr.mxu0 0.0
        %1159 = vmatpush1.msra.mxu0 0.0
        %1160 = vmatprep.subr.mxu0 0.0
        %1161 = vmatpush1.msra.mxu0 0.0
        %1162 = vmatprep.subr.mxu0 0.0
        %1163 = vmatpush1.msra.mxu0 0.0
        %1164 = vmatprep.subr.mxu0 0.0
        %1165 = vmatpush1.msra.mxu0 0.0
        %1166 = vmatprep.subr.mxu0 0.0
        %1167 = vmatpush1.msra.mxu0 0.0
        %1168 = vmatprep.subr.mxu0 0.0
        %1169 = vmatpush1.msra.mxu0 0.0
        %1170 = vmatprep.subr.mxu0 0.0
        %1171 = vmatpush1.msra.mxu0 0.0
        %1172 = vmatprep.subr.mxu0 0.0
        %1173 = vmatpush1.msra.mxu0 0.0
        %1174 = vmatprep.subr.mxu0 0.0
        %1175 = vmatpush1.msra.mxu0 0.0
        %1176 = vmatprep.subr.mxu0 0.0
        %1177 = vmatpush1.msra.mxu0 0.0
        %1178 = vmatprep.subr.mxu0 0.0
        %1179 = vmatpush1.msra.mxu0 0.0
        %1180 = vmatprep.subr.mxu0 0.0
        %1181 = vmatpush1.msra.mxu0 0.0
        %1182 = vmatprep.subr.mxu0 0.0
        %1183 = vmatpush1.msra.mxu0 0.0
        %1184 = vmatprep.subr.mxu0 0.0
        %1185 = vmatpush1.msra.mxu0 0.0
        %1186 = vmatprep.subr.mxu0 %v1154
        %1187 = vmatpush1.msra.mxu0 %v1152
        %1188 = vmatprep.subr.mxu0 0.0
        %1189 = vmatpush2.msra.mxu0 0.0
        %1190 = vmatprep.subr.mxu0 0.0
        %1191 = vmatpush2.msra.mxu0 0.0
        %1192 = vmatprep.subr.mxu0 0.0
        %1193 = vmatpush2.msra.mxu0 0.0
        %1194 = vmatprep.subr.mxu0 0.0
        %1195 = vmatpush2.msra.mxu0 0.0
        %1196 = vmatprep.subr.mxu0 0.0
        %1197 = vmatpush2.msra.mxu0 0.0
        %1198 = vmatprep.subr.mxu0 0.0
        %1199 = vmatpush2.msra.mxu0 0.0
        %1200 = vmatprep.subr.mxu0 0.0
        %1201 = vmatpush2.msra.mxu0 0.0
        %1202 = vmatprep.subr.mxu0 0.0
        %1203 = vmatpush2.msra.mxu0 0.0
        %1204 = vmatprep.subr.mxu0 0.0
        %1205 = vmatpush2.msra.mxu0 0.0
        %1206 = vmatprep.subr.mxu0 0.0
        %1207 = vmatpush2.msra.mxu0 0.0
        %1208 = vmatprep.subr.mxu0 0.0
        %1209 = vmatpush2.msra.mxu0 0.0
        %1210 = vmatprep.subr.mxu0 0.0
        %1211 = vmatpush2.msra.mxu0 0.0
        %1212 = vmatprep.subr.mxu0 0.0
        %1213 = vmatpush2.msra.mxu0 0.0
        %1214 = vmatprep.subr.mxu0 0.0
        %1215 = vmatpush2.msra.mxu0 0.0
        %1216 = vmatprep.subr.mxu0 0.0
        %1217 = vmatpush2.msra.mxu0 0.0
        %1218 = vmatprep.subr.mxu0 0.0
        %1219 = vmatpush2.msra.mxu0 0.0
        %1220 = vmatprep.mubr.f32.mxu0 0.0
        %1221 = vmatmul.mubr.f32.gmra.mxu0 %v1150
        %v1222 = vpop.f32.mrf.mxu0
        %v1223 = vadd.f32 0.0, %v1222
        %v1224 = vpop.f32.mrf.mxu0
        %v1225 = vadd.f32 0.0, %v1224
        %1226 = vdwg.mxu0
        %v1227 = vadd.f32 %v1121, %v1223
        %v1228 = vadd.f32 %v1122, %v1225
        %v1229 = vld [vmem:[%s3] sm:$0xf]
        %1231 = vset.pattern.permute.xlu0 0
        %1232 = vperm.xlu0 %1231, %v1229
        %v1233 = vpop.permute.xlu0 %1232
        %v1235 = vadd.f32 %v1227, %v1233
        %v1236 = vadd.f32 %v1228, %v1233
        %v1237 = vmax.f32 %v1235, 0.0
        %v1238 = vmax.f32 %v1236, 0.0
        %v1239 = vsel %vm350, %v1237, 0.0
        %v1240 = vsel %vm350, %v1238, 0.0
        %v1241 = vadd.f32 %v1239, %v1240
        %1242 = vadd.xlane.f32.xlu0 %v1241
        %v1243 = vpop.xlane.xlu0 %1242
        %v1244 = vmul.f32 %v1243, 0.00390625
        %v1245 = vld [vmem:[%s4] sm:$0xf]
        %v1246 = vmul.f32 %v1245, %v1244
        %vm1247 = vcmask 27648
        %v1248 = vsel %vm1247, %v1246, 0.0
        %v1249 = vrot.slane %v1248, 4
        %v1250 = vadd.f32 %v1248, %v1249
        %v1251 = vrot.slane %v1250, 2
        %v1252 = vadd.f32 %v1250, %v1251
        %v1253 = vrot.slane %v1252, 1
        %v1254 = vadd.f32 %v1252, %v1253
        %v1255 = vld [vmem:[%s5] sm:$0x1]
        %v1256 = vadd.f32 %v1254, %v1255
        %v1257 = vmax.f32 %v1256, 0.0
        %v1258 = vld [vmem:[%s6] sm:$0xf]
        %v1259 = vlaneseq
        %v1260 = vshrl.u32 %v1259, 7
        %v1261 = vsub.s32 0, %v1260
        %v1262 = vrot.slane %v1257, %v1261
        %v1263 = vmul.f32 %v1258, %v1262
        %v1264 = vsel %vm1247, %v1263, 0.0
        %1265 = vadd.xlane.f32.xlu0 %v1264
        %v1266 = vpop.xlane.xlu0 %1265
        %v1267 = vld [vmem:[%s7] sm:$0xf]
        %v1268 = vadd.f32 %v1266, %v1267
        %v1269 = vxor.u32 %v1268, 2147483648
        %v1270 = vmul.f32 %v1269, 1.442695
        %v1271 = vpow.pop %v1270
        %v1272 = vadd.f32 %v1271, 1.0
        %v1273 = vrcp.pop %v1272
        %v1274 = vmul.f32 1.0, %v1273
        %v1275 = vadd.f32 %v1274, 1.0
        %1277 = vset.pattern.permute.xlu0 0
        %1278 = vperm.xlu0 %1277, %v1275
        %v1279 = vpop.permute.xlu0 %1278
        %v1281 = vmul.f32 %v1237, %v1279
        %v1282 = vmul.f32 %v1238, %v1279
        %v1285 = vcombine.low %v1281, %v1282
        %1287 = vst [vmem:[%s298] sm:$0xff] %v1285
        %s1288 = sand.u32 %s203, 1
        %s1289 = scalar_lea.sflag [#allocation3], %s1288
        %s1290 = sand.u32 %s203, 1
        %s1291 = smul.addr %s1290, 8
        %s1292 = scalar_lea.vmem [#allocation2], %s1291
        // Predicated region
        $region53: #{tpu_custom_call.1} parent=51 // pred_check
          %p1293 = pneg %p213
        $region54: #{tpu_custom_call.1} parent=51 // pred_check_branch
          %1295 = sbr.rel (%p1293) target = $region56
        $region55: #{tpu_custom_call.1} parent=51 // pred_region
          %s1297 = ssub.s32 128, 128
          %1298 = vsyncadd %s1289, %s1297
          %s1299 = smul.addr %s22, 2
          %s1300 = smul.addr %s1299, 64
          %s1301 = scalar_lea.hbm %s8, %s1300
          %s1303 = sshll.u32 %s1292, 4
          %s1304 = int_to_ptr.vmem [resolvable:$true] %s1303
          %1306 = dma.vmem_to_hbm [thread:$0]  %s1304, 128, %s1301, %s1289
        $region56: #{tpu_custom_call.1} parent=51 // pred_fallthru
          _
      $region52: #{tpu_custom_call.1} parent=5 // pred_fallthru
        _
      %p1307 = scmp.le.s32.totalorder 2, %s17
      // Predicated region
      $region57: #{tpu_custom_call.1} parent=5 // pred_check
        %p1308 = pneg %p1307
      $region58: #{tpu_custom_call.1} parent=5 // pred_check_branch
        %1310 = sbr.rel (%p1308) target = $region60
      $region59: #{tpu_custom_call.1} parent=5 // pred_region
        %s1311 = ssub.s32 %s17, 2
        // Predicated region
        $region61: #{tpu_custom_call.1} parent=59 // pred_check
          %p1312 = pneg %p219
        $region62: #{tpu_custom_call.1} parent=59 // pred_check_branch
          %1314 = sbr.rel (%p1312) target = $region64
        $region63: #{tpu_custom_call.1} parent=59 // pred_region
          %s1315 = sand.u32 %s204, 1
          %s1316 = scalar_lea.sflag [#allocation3], %s1315
          %s1317 = sand.u32 %s204, 1
          %s1318 = smul.addr %s1317, 8
          %s1319 = scalar_lea.vmem [#allocation2], %s1318
          %1320 = dma.done %s1316, 128
        $region64: #{tpu_custom_call.1} parent=59 // pred_fallthru
          _
      $region60: #{tpu_custom_call.1} parent=5 // pred_fallthru
        _
    $region6: #{tpu_custom_call.1} parent=1 // loop_footer
      %s21 = sadd.s32 1, %s17
    $region7: #{tpu_custom_call.1} parent=1 // loop_footer_branch
      %16 = sbr.rel target = $region3
    $region8: #{tpu_custom_call.1} parent=1 // loop_exit
      _
    %1321 = vsyncpa [#allocation3], 1
    %s1322 = scalar_lea.sflag [#allocation3], 1
    %1323 = vsyncpa %s1322, 1

</llo_original>
